<compile_context>
chip_gen: v6e
topology: v6e:2x2x1
jax: 0.10.0
libtpu: 0.0.40
codegen_flags: <defaults>
</compile_context>

<pallas_src>
import functools
import math

import jax
import jax.numpy as jnp
import numpy as np
from jax import lax
from jax.experimental import pallas as pl
from jax.experimental.pallas import tpu as pltpu

EPS = 1e-5        # config.layer_norm_eps
MASK_PAD = -1e9   # additive mask for padded key columns


def _layer_norm(v, g, b):
    mu = jnp.mean(v, axis=-1, keepdims=True)
    c = v - mu
    var = jnp.mean(c * c, axis=-1, keepdims=True)
    return c * lax.rsqrt(var + EPS) * g + b


# ----------------------------- tiling plans ---------------------------------

def _head_group_plan(num_heads, head_dim, target_lanes=256):
    """Heads per grid step: LARGEST divisor of num_heads whose lane width is a
    multiple of 128 and <= target_lanes (256 fills the v6e/v7x MXU); else the
    smallest 128-multiple; else all heads (full-D fallback for tiny models)."""
    cands = [g for g in range(1, num_heads + 1)
             if num_heads % g == 0 and (g * head_dim) % 128 == 0]
    if not cands:
        return num_heads
    within = [g for g in cands if g * head_dim <= target_lanes]
    return max(within) if within else min(cands)


def _mlp_chunk_plan(inter_size, target=512):
    """Intermediate-dim chunk: largest divisor of I that is a multiple of 128
    and <= target, so fc1/fc2 pipeline through double buffers and the live
    (rows, I_chunk) activation stays bounded; full I if no such divisor."""
    cands = [c for c in range(128, inter_size + 1, 128) if inter_size % c == 0]
    if not cands:
        return inter_size
    within = [c for c in cands if c <= target]
    return max(within) if within else min(cands)


def _row_block_plan(seq_len, max_rows=512):
    """Row blocking (query rows in kernel A, rows in kernel B).  Returns
    (rows_per_block, num_blocks, padded_seq_len).  Blocks are multiples of 8
    sublanes and tile the padded length exactly (no partial / OOB blocks)."""
    if seq_len <= max_rows:
        return seq_len, 1, seq_len
    nblocks = math.ceil(seq_len / max_rows)
    rows = math.ceil(math.ceil(seq_len / nblocks) / 8) * 8
    nblocks = math.ceil(seq_len / rows)
    return rows, nblocks, rows * nblocks


def _vmem_limit_bytes():
    """Per-generation VMEM budget: ~80% of physical capacity (headroom for
    compiler scratch / double buffers); conservative 48 MiB if unavailable."""
    try:  # narrow: guards only the hardware query, never kernel lowering
        return int(pltpu.get_tpu_info().vmem_capacity_bytes * 0.8)
    except Exception:
        return 48 * 1024 * 1024


# ------------------------------- kernels -------------------------------------

def attention_kernel(x_ref, mask_ref, ln1_g_ref, ln1_b_ref,
                     wqkv_ref, bqkv_ref, wo_ref, bo_ref,
                     x1_ref, hln_ref, acc_ref,
                     *, heads_per_step, head_dim, q_rows, num_q_blocks):
    qb = pl.program_id(1)
    hg = pl.program_id(2)
    hd = head_dim
    gw = heads_per_step * hd
    row0 = pl.multiple_of(qb * q_rows, 8) if num_q_blocks > 1 else None

    # LN1 over the full sequence (needed for K/V) once per (batch, q-block);
    # accumulator starts as residual rows + out_proj bias.
    @pl.when(hg == 0)
    def _():
        h = _layer_norm(x_ref[...], ln1_g_ref[...], ln1_b_ref[...])
        hln_ref[...] = h.astype(hln_ref.dtype)
        x_rows = x_ref[...] if row0 is None else x_ref[pl.ds(row0, q_rows), :]
        acc_ref[...] = x_rows + bo_ref[...]

    # Fused q|k|v projection for this head group (scale folded into q part).
    h = hln_ref[...]                                              # (S, D) bf16
    qkv = (jnp.dot(h, wqkv_ref[...], preferred_element_type=jnp.float32)
           + bqkv_ref[...]).astype(jnp.bfloat16)                  # (S, 3*gw)
    k = qkv[:, gw:2 * gw]
    v = qkv[:, 2 * gw:3 * gw]
    if row0 is None:
        q = qkv[:, 0:gw]                                          # (Sq, gw)
    else:
        q = lax.dynamic_slice_in_dim(qkv[:, 0:gw], row0, q_rows, axis=0)
    mask = mask_ref[...]                                          # (Sq, S) f32

    for g in range(heads_per_step):
        lo = g * hd
        qh = q[:, lo:lo + hd]
        kh = k[:, lo:lo + hd]
        vh = v[:, lo:lo + hd]
        # q @ k^T contracting last dims (no transpose / XLU relayout).
        s = lax.dot_general(qh, kh, (((1,), (1,)), ((), ())),
                            preferred_element_type=jnp.float32) + mask
        s = s - jnp.max(s, axis=-1, keepdims=True)
        p = jnp.exp(s)
        denom = jnp.sum(p, axis=-1, keepdims=True)                # (Sq, 1)
        # dropout(p=0.0) == identity
        oh = jnp.dot(p.astype(jnp.bfloat16), vh,
                     preferred_element_type=jnp.float32)          # (Sq, hd)
        oh = oh * pl.reciprocal(denom, approx=True)               # post-PV norm
        # Stream this head straight through its out_proj slab (no staging).
        acc_ref[...] += jnp.dot(oh.astype(jnp.bfloat16), wo_ref[lo:lo + hd, :],
                                preferred_element_type=jnp.float32)

    @pl.when(hg == pl.num_programs(2) - 1)
    def _():
        x1_ref[...] = acc_ref[...].astype(x1_ref.dtype)


def mlp_kernel(x1_ref, ln2_g_ref, ln2_b_ref, w1_ref, b1_ref, w2_ref, b2_ref,
               out_ref, h2_ref, acc_ref, *, activation):
    ic = pl.program_id(2)

    # LN2 + accumulator init (residual + fc2 bias) once per (batch, row-block).
    @pl.when(ic == 0)
    def _():
        x1 = x1_ref[...]
        h2_ref[...] = _layer_norm(
            x1, ln2_g_ref[...], ln2_b_ref[...]).astype(h2_ref.dtype)
        acc_ref[...] = x1 + b2_ref[...]

    f = (jnp.dot(h2_ref[...], w1_ref[...], preferred_element_type=jnp.float32)
         + b1_ref[...])                                           # (Sr, Ic)
    if activation == "quick_gelu":
        f = f * jax.nn.sigmoid(1.702 * f)                         # CLIP default
    elif activation == "gelu":
        f = jax.nn.gelu(f)
    else:
        raise ValueError(f"unsupported hidden_act: {activation}")
    acc_ref[...] += jnp.dot(f.astype(jnp.bfloat16), w2_ref[...],
                            preferred_element_type=jnp.float32)

    @pl.when(ic == pl.num_programs(2) - 1)
    def _():
        out_ref[...] = acc_ref[...].astype(out_ref.dtype)


# --------------------------- parameter preparation ---------------------------

def prepare_params(params, num_heads):
    """Fold the attention scale into q_proj, fuse q/k/v into one group-major
    (D, 3*D) weight, cast matmul weights to bf16 (MXU-native); biases and LN
    params stay f32."""
    D = params["wq"].shape[0]
    head_dim = D // num_heads
    hps = _head_group_plan(num_heads, head_dim)
    ng = num_heads // hps
    gw = hps * head_dim
    scale = head_dim ** -0.5
    f32, bf16 = jnp.float32, jnp.bfloat16

    wq, bq = params["wq"] * scale, params["bq"] * scale
    wk, bk = params["wk"], params["bk"]
    wv, bv = params["wv"], params["bv"]
    # Group-major interleave: [q_g | k_g | v_g] per head group g.
    wqkv = jnp.concatenate(
        [jnp.concatenate([wq[:, g * gw:(g + 1) * gw],
                          wk[:, g * gw:(g + 1) * gw],
                          wv[:, g * gw:(g + 1) * gw]], axis=1)
         for g in range(ng)], axis=1)
    bqkv = jnp.concatenate(
        [jnp.concatenate([bq[:, g * gw:(g + 1) * gw],
                          bk[:, g * gw:(g + 1) * gw],
                          bv[:, g * gw:(g + 1) * gw]], axis=1)
         for g in range(ng)], axis=1)

    return {
        "ln1_g": params["ln1_g"].astype(f32), "ln1_b": params["ln1_b"].astype(f32),
        "wqkv": wqkv.astype(bf16), "bqkv": bqkv.astype(f32),
        "wo": params["wo"].astype(bf16), "bo": params["bo"].astype(f32),
        "ln2_g": params["ln2_g"].astype(f32), "ln2_b": params["ln2_b"].astype(f32),
        "w1": params["w1"].astype(bf16), "b1": params["b1"].astype(f32),
        "w2": params["w2"].astype(bf16), "b2": params["b2"].astype(f32),
    }


# ------------------------------ pallas_call builders -------------------------

def _build_attention(B, S_pad, D, gw, ng, hps, head_dim, q_rows, nqb, mask_batched):
    if mask_batched:
        mask_idx = lambda b, qb, hg: (b, qb, 0)
    else:
        mask_idx = lambda b, qb, hg: (0, qb, 0)
    in_specs = [
        pl.BlockSpec((None, S_pad, D), lambda b, qb, hg: (b, 0, 0)),   # x
        pl.BlockSpec((None, q_rows, S_pad), mask_idx),                 # combined mask
        pl.BlockSpec((1, D), lambda b, qb, hg: (0, 0)),                # ln1 gamma
        pl.BlockSpec((1, D), lambda b, qb, hg: (0, 0)),                # ln1 beta
        pl.BlockSpec((D, 3 * gw), lambda b, qb, hg: (0, hg)),          # fused qkv slab
        pl.BlockSpec((1, 3 * gw), lambda b, qb, hg: (0, hg)),          # fused qkv bias
        pl.BlockSpec((gw, D), lambda b, qb, hg: (hg, 0)),              # out_proj slab
        pl.BlockSpec((1, D), lambda b, qb, hg: (0, 0)),                # out_proj bias
    ]
    kernel = functools.partial(
        attention_kernel, heads_per_step=hps, head_dim=head_dim,
        q_rows=q_rows, num_q_blocks=nqb)
    return pl.pallas_call(
        kernel,
        out_shape=jax.ShapeDtypeStruct((B, S_pad, D), jnp.float32),
        grid_spec=pltpu.PrefetchScalarGridSpec(
            num_scalar_prefetch=0,
            grid=(B, nqb, ng),
            in_specs=in_specs,
            out_specs=pl.BlockSpec((None, q_rows, D), lambda b, qb, hg: (b, qb, 0)),
            scratch_shapes=[
                pltpu.VMEM((S_pad, D), jnp.bfloat16),   # ln1(x), full rows (K/V)
                pltpu.VMEM((q_rows, D), jnp.float32),   # attn + out_proj accumulator
            ]),
        compiler_params=pltpu.CompilerParams(
            dimension_semantics=("parallel", "parallel", "arbitrary"),
            vmem_limit_bytes=_vmem_limit_bytes()),
    )


def _build_mlp(B, S_pad, D, ic_size, n_ic, rows, nrb, out_dtype, activation):
    in_specs = [
        pl.BlockSpec((None, rows, D), lambda b, rb, ic: (b, rb, 0)),   # x1 rows
        pl.BlockSpec((1, D), lambda b, rb, ic: (0, 0)),                # ln2 gamma
        pl.BlockSpec((1, D), lambda b, rb, ic: (0, 0)),                # ln2 beta
        pl.BlockSpec((D, ic_size), lambda b, rb, ic: (0, ic)),         # fc1 chunk
        pl.BlockSpec((1, ic_size), lambda b, rb, ic: (0, ic)),         # fc1 bias chunk
        pl.BlockSpec((ic_size, D), lambda b, rb, ic: (ic, 0)),         # fc2 chunk
        pl.BlockSpec((1, D), lambda b, rb, ic: (0, 0)),                # fc2 bias
    ]
    kernel = functools.partial(mlp_kernel, activation=activation)
    return pl.pallas_call(
        kernel,
        out_shape=jax.ShapeDtypeStruct((B, S_pad, D), out_dtype),
        grid_spec=pltpu.PrefetchScalarGridSpec(
            num_scalar_prefetch=0,
            grid=(B, nrb, n_ic),
            in_specs=in_specs,
            out_specs=pl.BlockSpec((None, rows, D), lambda b, rb, ic: (b, rb, 0)),
            scratch_shapes=[
                pltpu.VMEM((rows, D), jnp.bfloat16),    # ln2(x1) row block
                pltpu.VMEM((rows, D), jnp.float32),     # residual + fc2 accumulator
            ]),
        compiler_params=pltpu.CompilerParams(
            dimension_semantics=("parallel", "parallel", "arbitrary"),
            vmem_limit_bytes=_vmem_limit_bytes()),
    )


# --------------------------------- wrapper -----------------------------------

def clip_encoder_layer(x, attention_mask, causal_attention_mask, prepared,
                       num_heads, *, max_rows=512, activation="quick_gelu"):
    # TODO(synk): is_add_fusion=True adapter/gated-projection branch not
    # implemented (module default is is_add_fusion=False, reproduced here).
    # TODO(synk): output_attentions=True not supported (weights never
    # materialized); dropout assumed p=0.0 / eval mode.
    B, S, D = x.shape
    head_dim = D // num_heads
    hps = _head_group_plan(num_heads, head_dim)
    ng = num_heads // hps
    gw = hps * head_dim
    I = prepared["w1"].shape[1]
    ic_size = _mlp_chunk_plan(I)
    n_ic = I // ic_size
    rows, nrb, S_pad = _row_block_plan(S, max_rows)

    # Pre-combined additive mask squeezed to (Bm, S, S).  If concretely
    # batch-invariant (common CLIP case) keep a single copy so it is DMA'd
    # once instead of per batch element.
    mask = (attention_mask + causal_attention_mask).astype(jnp.float32)[:, 0]
    if mask.shape[0] > 1:
        try:  # narrow: concretization check only — never hides kernel errors
            m_np = np.asarray(mask)
            if bool((m_np == m_np[:1]).all()):
                mask = mask[:1]
        except (jax.errors.TracerArrayConversionError,
                jax.errors.ConcretizationTypeError, TypeError):
            pass
    mask_batched = mask.shape[0] > 1

    x_in = x.astype(jnp.float32)
    if S_pad != S:
        pad = S_pad - S
        x_in = jnp.pad(x_in, ((0, 0), (0, pad), (0, 0)))
        mask = jnp.pad(mask, ((0, 0), (0, pad), (0, 0)))                 # query rows
        mask = jnp.pad(mask, ((0, 0), (0, 0), (0, pad)),
                       constant_values=MASK_PAD)                         # key cols

    attn = _build_attention(B, S_pad, D, gw, ng, hps, head_dim, rows, nrb,
                            mask_batched)
    x1 = attn(x_in, mask,
              prepared["ln1_g"], prepared["ln1_b"],
              prepared["wqkv"], prepared["bqkv"],
              prepared["wo"], prepared["bo"])

    mlp = _build_mlp(B, S_pad, D, ic_size, n_ic, rows, nrb, x.dtype, activation)
    out = mlp(x1, prepared["ln2_g"], prepared["ln2_b"],
              prepared["w1"], prepared["b1"], prepared["w2"], prepared["b2"])

    if S_pad != S:
        out = out[:, :S, :]
    return out


# ------------------------------- reference -----------------------------------

def reference(x, amask, cmask, p, num_heads, activation="quick_gelu"):
    """Pure-JAX f32 reimplementation of the PyTorch forward (validation)."""
    B, S, D = x.shape
    hd = D // num_heads

    def ln(v, g, b):
        mu = v.mean(-1, keepdims=True)
        var = ((v - mu) ** 2).mean(-1, keepdims=True)
        return (v - mu) / jnp.sqrt(var + EPS) * g + b

    res = x
    h = ln(x, p["ln1_g"], p["ln1_b"])
    q = (h @ p["wq"] + p["bq"]) * (hd ** -0.5)
    k = h @ p["wk"] + p["bk"]
    v = h @ p["wv"] + p["bv"]

    def split(t):
        return t.reshape(B, S, num_heads, hd).transpose(0, 2, 1, 3)

    q, k, v = split(q), split(k), split(v)
    scores = jnp.einsum("bhqd,bhkd->bhqk", q, k) + cmask + amask
    pr = jax.nn.softmax(scores, axis=-1)
    o = jnp.einsum("bhqk,bhkd->bhqd", pr, v).transpose(0, 2, 1, 3).reshape(B, S, D)
    o = o @ p["wo"] + p["bo"]
    x = res + o
    res = x
    h2 = ln(x, p["ln2_g"], p["ln2_b"])
    f = h2 @ p["w1"] + p["b1"]
    if activation == "quick_gelu":
        f = f * jax.nn.sigmoid(1.702 * f)
    else:
        f = jax.nn.gelu(f)
    f = f @ p["w2"] + p["b2"]
    return res + f


if __name__ == "__main__":
    # Small CLIP-like config.
    B, S, D = 2, 8, 32
    NUM_HEADS = 4
    INTER = 4 * D  # intermediate_size

    ks = jax.random.split(jax.random.PRNGKey(0), 17)

    def w(k, shape, scale=0.02):
        return (scale * jax.random.normal(k, shape)).astype(jnp.float32)

    params = {
        "ln1_g": jnp.ones((1, D), jnp.float32) + w(ks[0], (1, D)),
        "ln1_b": w(ks[1], (1, D)),
        "wq": w(ks[2], (D, D)), "bq": w(ks[3], (1, D)),
        "wk": w(ks[4], (D, D)), "bk": w(ks[5], (1, D)),
        "wv": w(ks[6], (D, D)), "bv": w(ks[7], (1, D)),
        "wo": w(ks[8], (D, D)), "bo": w(ks[9], (1, D)),
        "ln2_g": jnp.ones((1, D), jnp.float32) + w(ks[10], (1, D)),
        "ln2_b": w(ks[11], (1, D)),
        "w1": w(ks[12], (D, INTER)), "b1": w(ks[13], (1, INTER)),
        "w2": w(ks[14], (INTER, D)), "b2": w(ks[15], (1, D)),
    }

    x = jax.random.normal(ks[16], (B, S, D), dtype=jnp.float32)
    # Additive attention mask (zeros = no masking) and a causal mask.
    attention_mask = jnp.zeros((B, 1, S, S), jnp.float32)
    causal = jnp.where(
        jnp.tril(jnp.ones((S, S), jnp.bool_)), 0.0, -1e9
    ).astype(jnp.float32)
    causal_attention_mask = jnp.broadcast_to(causal, (B, 1, S, S))

    prepared = prepare_params(params, NUM_HEADS)
    out = clip_encoder_layer(x, attention_mask, causal_attention_mask,
                             prepared, NUM_HEADS)
    out = jax.block_until_ready(out)

    ref = reference(x, attention_mask, causal_attention_mask, params, NUM_HEADS)
    # bf16 matmul operands + approx reciprocal -> loosened tolerance vs f32 ref.
    np.testing.assert_allclose(np.asarray(out), np.asarray(ref),
                               rtol=2e-2, atol=2e-2)

    print("KERNEL_OK")
</pallas_src>

<mosaic_0001>
module attributes {stable_mosaic.version = 11 : i64} {
  func.func @attention_kernel(%arg0: i32, %arg1: i32, %arg2: i32, %arg3: memref<1x8x32xf32, #tpu.memory_space<vmem>>, %arg4: memref<1x8x8xf32, #tpu.memory_space<vmem>>, %arg5: memref<1x32xf32, #tpu.memory_space<vmem>>, %arg6: memref<1x32xf32, #tpu.memory_space<vmem>>, %arg7: memref<32x96xbf16, #tpu.memory_space<vmem>>, %arg8: memref<1x96xf32, #tpu.memory_space<vmem>>, %arg9: memref<32x32xbf16, #tpu.memory_space<vmem>>, %arg10: memref<1x32xf32, #tpu.memory_space<vmem>>, %arg11: memref<1x8x32xf32, #tpu.memory_space<vmem>>, %arg12: memref<8x32xbf16, #tpu.memory_space<vmem>>, %arg13: memref<8x32xf32, #tpu.memory_space<vmem>>) attributes {dimension_semantics = [#tpu.dimension_semantics<parallel>, #tpu.dimension_semantics<parallel>, #tpu.dimension_semantics<arbitrary>], iteration_bounds = array<i64: 2, 1, 1>, scalar_prefetch = 0 : i64, scratch_operands = 2 : i64, tpu.core_type = #tpu.core_type<tc>, window_params = [{transform_indices = @transform_0, window_bounds = array<i64: 1, 8, 32>}, {transform_indices = @transform_1, window_bounds = array<i64: 1, 8, 8>}, {pipeline_mode = #tpu.pipeline_mode<synchronous>, transform_indices = @transform_2, window_bounds = array<i64: 1, 32>}, {pipeline_mode = #tpu.pipeline_mode<synchronous>, transform_indices = @transform_3, window_bounds = array<i64: 1, 32>}, {transform_indices = @transform_4, window_bounds = array<i64: 32, 96>}, {transform_indices = @transform_5, window_bounds = array<i64: 1, 96>}, {transform_indices = @transform_6, window_bounds = array<i64: 32, 32>}, {pipeline_mode = #tpu.pipeline_mode<synchronous>, transform_indices = @transform_7, window_bounds = array<i64: 1, 32>}, {transform_indices = @transform_8, window_bounds = array<i64: 1, 8, 32>}]} {
    %c0_i32 = arith.constant 0 : i32
    %0 = arith.cmpi eq, %arg2, %c0_i32 : i32
    %1 = arith.extui %0 : i1 to i32
    %c0_i32_0 = arith.constant 0 : i32
    %2 = arith.cmpi ne, %1, %c0_i32_0 : i32
    scf.if %2 {
      %c0_52 = arith.constant 0 : index
      %c0_53 = arith.constant 0 : index
      %c0_54 = arith.constant 0 : index
      %110 = vector.load %arg3[%c0_52, %c0_53, %c0_54] : memref<1x8x32xf32, #tpu.memory_space<vmem>>, vector<1x8x32xf32>
      %111 = vector.shape_cast %110 : vector<1x8x32xf32> to vector<8x32xf32>
      %c0_55 = arith.constant 0 : index
      %c0_56 = arith.constant 0 : index
      %112 = vector.load %arg5[%c0_55, %c0_56] : memref<1x32xf32, #tpu.memory_space<vmem>>, vector<1x32xf32>
      %c0_57 = arith.constant 0 : index
      %c0_58 = arith.constant 0 : index
      %113 = vector.load %arg6[%c0_57, %c0_58] : memref<1x32xf32, #tpu.memory_space<vmem>>, vector<1x32xf32>
      %cst_59 = arith.constant dense<0.000000e+00> : vector<8xf32>
      %114 = vector.multi_reduction <add>, %111, %cst_59 [1] : vector<8x32xf32> to vector<8xf32>
      %115 = vector.shape_cast %114 : vector<8xf32> to vector<8x1xf32>
      %cst_60 = arith.constant 3.200000e+01 : f32
      %116 = vector.broadcast %cst_60 : f32 to vector<8x1xf32>
      %117 = arith.divf %115, %116 : vector<8x1xf32>
      %118 = vector.broadcast %117 : vector<8x1xf32> to vector<8x32xf32>
      %119 = arith.subf %111, %118 : vector<8x32xf32>
      %120 = arith.mulf %119, %119 : vector<8x32xf32>
      %cst_61 = arith.constant dense<0.000000e+00> : vector<8xf32>
      %121 = vector.multi_reduction <add>, %120, %cst_61 [1] : vector<8x32xf32> to vector<8xf32>
      %122 = vector.shape_cast %121 : vector<8xf32> to vector<8x1xf32>
      %cst_62 = arith.constant 3.200000e+01 : f32
      %123 = vector.broadcast %cst_62 : f32 to vector<8x1xf32>
      %124 = arith.divf %122, %123 : vector<8x1xf32>
      %cst_63 = arith.constant 9.99999974E-6 : f32
      %125 = vector.broadcast %cst_63 : f32 to vector<8x1xf32>
      %126 = arith.addf %124, %125 : vector<8x1xf32>
      %127 = math.rsqrt %126 : vector<8x1xf32>
      %128 = vector.broadcast %127 : vector<8x1xf32> to vector<8x32xf32>
      %129 = arith.mulf %119, %128 : vector<8x32xf32>
      %130 = vector.broadcast %112 : vector<1x32xf32> to vector<8x32xf32>
      %131 = arith.mulf %129, %130 : vector<8x32xf32>
      %132 = vector.broadcast %113 : vector<1x32xf32> to vector<8x32xf32>
      %133 = arith.addf %131, %132 : vector<8x32xf32>
      %134 = arith.truncf %133 : vector<8x32xf32> to vector<8x32xbf16>
      %c0_64 = arith.constant 0 : index
      %c0_65 = arith.constant 0 : index
      %135 = vector.load %arg12[%c0_64, %c0_65] : memref<8x32xbf16, #tpu.memory_space<vmem>>, vector<8x32xbf16>
      tpu.vector_store %arg12[%c0_64, %c0_65], %134 {strides = array<i32>} : memref<8x32xbf16, #tpu.memory_space<vmem>>, vector<8x32xbf16>,
      %c0_66 = arith.constant 0 : index
      %c0_67 = arith.constant 0 : index
      %c0_68 = arith.constant 0 : index
      %136 = vector.load %arg3[%c0_66, %c0_67, %c0_68] : memref<1x8x32xf32, #tpu.memory_space<vmem>>, vector<1x8x32xf32>
      %137 = vector.shape_cast %136 : vector<1x8x32xf32> to vector<8x32xf32>
      %c0_69 = arith.constant 0 : index
      %c0_70 = arith.constant 0 : index
      %138 = vector.load %arg10[%c0_69, %c0_70] : memref<1x32xf32, #tpu.memory_space<vmem>>, vector<1x32xf32>
      %139 = vector.broadcast %138 : vector<1x32xf32> to vector<8x32xf32>
      %140 = arith.addf %137, %139 : vector<8x32xf32>
      %c0_71 = arith.constant 0 : index
      %c0_72 = arith.constant 0 : index
      %141 = vector.load %arg13[%c0_71, %c0_72] : memref<8x32xf32, #tpu.memory_space<vmem>>, vector<8x32xf32>
      tpu.vector_store %arg13[%c0_71, %c0_72], %140 {strides = array<i32>} : memref<8x32xf32, #tpu.memory_space<vmem>>, vector<8x32xf32>,
    } else {
    }
    %c0 = arith.constant 0 : index
    %c0_1 = arith.constant 0 : index
    %3 = vector.load %arg12[%c0, %c0_1] : memref<8x32xbf16, #tpu.memory_space<vmem>>, vector<8x32xbf16>
    %c0_2 = arith.constant 0 : index
    %c0_3 = arith.constant 0 : index
    %4 = vector.load %arg7[%c0_2, %c0_3] : memref<32x96xbf16, #tpu.memory_space<vmem>>, vector<32x96xbf16>
    %cst = arith.constant dense<0.000000e+00> : vector<8x96xf32>
    %5 = tpu.matmul %3, %4, %cst {dimension_numbers = #tpu.dot_dimension_numbers<[1], [0], [0], [1], [0, 0, 1, 1], [], []>} : vector<8x32xbf16>, vector<32x96xbf16>, vector<8x96xf32> -> vector<8x96xf32>
    %c0_4 = arith.constant 0 : index
    %c0_5 = arith.constant 0 : index
    %6 = vector.load %arg8[%c0_4, %c0_5] : memref<1x96xf32, #tpu.memory_space<vmem>>, vector<1x96xf32>
    %7 = vector.broadcast %6 : vector<1x96xf32> to vector<8x96xf32>
    %8 = arith.addf %5, %7 : vector<8x96xf32>
    %9 = arith.truncf %8 : vector<8x96xf32> to vector<8x96xbf16>
    %10 = vector.extract_strided_slice %9 {offsets = [0, 32], sizes = [8, 32], strides = [1, 1]} : vector<8x96xbf16> to vector<8x32xbf16>
    %11 = vector.extract_strided_slice %9 {offsets = [0, 64], sizes = [8, 32], strides = [1, 1]} : vector<8x96xbf16> to vector<8x32xbf16>
    %12 = vector.extract_strided_slice %9 {offsets = [0, 0], sizes = [8, 32], strides = [1, 1]} : vector<8x96xbf16> to vector<8x32xbf16>
    %c0_6 = arith.constant 0 : index
    %c0_7 = arith.constant 0 : index
    %c0_8 = arith.constant 0 : index
    %13 = vector.load %arg4[%c0_6, %c0_7, %c0_8] : memref<1x8x8xf32, #tpu.memory_space<vmem>>, vector<1x8x8xf32>
    %14 = vector.shape_cast %13 : vector<1x8x8xf32> to vector<8x8xf32>
    %15 = vector.extract_strided_slice %12 {offsets = [0, 0], sizes = [8, 8], strides = [1, 1]} : vector<8x32xbf16> to vector<8x8xbf16>
    %16 = vector.extract_strided_slice %10 {offsets = [0, 0], sizes = [8, 8], strides = [1, 1]} : vector<8x32xbf16> to vector<8x8xbf16>
    %17 = vector.extract_strided_slice %11 {offsets = [0, 0], sizes = [8, 8], strides = [1, 1]} : vector<8x32xbf16> to vector<8x8xbf16>
    %cst_9 = arith.constant dense<0.000000e+00> : vector<8x8xf32>
    %18 = tpu.matmul %15, %16, %cst_9 {dimension_numbers = #tpu.dot_dimension_numbers<[1], [1], [0], [0], [0, 0, 1, 0], [], []>} : vector<8x8xbf16>, vector<8x8xbf16>, vector<8x8xf32> -> vector<8x8xf32>
    %19 = arith.addf %18, %14 : vector<8x8xf32>
    %cst_10 = arith.constant dense<0xFF800000> : vector<8xf32>
    %20 = vector.multi_reduction <maximumf>, %19, %cst_10 [1] : vector<8x8xf32> to vector<8xf32>
    %21 = vector.shape_cast %20 : vector<8xf32> to vector<8x1xf32>
    %22 = vector.broadcast %21 : vector<8x1xf32> to vector<8x8xf32>
    %23 = arith.subf %19, %22 : vector<8x8xf32>
    %24 = math.exp %23 : vector<8x8xf32>
    %cst_11 = arith.constant dense<0.000000e+00> : vector<8xf32>
    %25 = vector.multi_reduction <add>, %24, %cst_11 [1] : vector<8x8xf32> to vector<8xf32>
    %26 = vector.shape_cast %25 : vector<8xf32> to vector<8x1xf32>
    %27 = arith.truncf %24 : vector<8x8xf32> to vector<8x8xbf16>
    %cst_12 = arith.constant dense<0.000000e+00> : vector<8x8xf32>
    %28 = tpu.matmul %27, %17, %cst_12 {dimension_numbers = #tpu.dot_dimension_numbers<[1], [0], [0], [1], [0, 0, 1, 1], [], []>} : vector<8x8xbf16>, vector<8x8xbf16>, vector<8x8xf32> -> vector<8x8xf32>
    %29 = tpu.reciprocal %26 {approx = true} : vector<8x1xf32> -> vector<8x1xf32>
    %30 = vector.broadcast %29 : vector<8x1xf32> to vector<8x8xf32>
    %31 = arith.mulf %28, %30 : vector<8x8xf32>
    %c0_13 = arith.constant 0 : index
    %c0_14 = arith.constant 0 : index
    %32 = vector.load %arg13[%c0_13, %c0_14] : memref<8x32xf32, #tpu.memory_space<vmem>>, vector<8x32xf32>
    %33 = arith.truncf %31 : vector<8x8xf32> to vector<8x8xbf16>
    %c0_15 = arith.constant 0 : index
    %c0_16 = arith.constant 0 : index
    %34 = vector.load %arg9[%c0_15, %c0_16] : memref<32x32xbf16, #tpu.memory_space<vmem>>, vector<8x32xbf16>
    %cst_17 = arith.constant dense<0.000000e+00> : vector<8x32xf32>
    %35 = tpu.matmul %33, %34, %cst_17 {dimension_numbers = #tpu.dot_dimension_numbers<[1], [0], [0], [1], [0, 0, 1, 1], [], []>} : vector<8x8xbf16>, vector<8x32xbf16>, vector<8x32xf32> -> vector<8x32xf32>
    %36 = arith.addf %32, %35 : vector<8x32xf32>
    %c0_18 = arith.constant 0 : index
    %c0_19 = arith.constant 0 : index
    %37 = vector.load %arg13[%c0_18, %c0_19] : memref<8x32xf32, #tpu.memory_space<vmem>>, vector<8x32xf32>
    tpu.vector_store %arg13[%c0_18, %c0_19], %36 {strides = array<i32>} : memref<8x32xf32, #tpu.memory_space<vmem>>, vector<8x32xf32>,
    %38 = vector.extract_strided_slice %12 {offsets = [0, 8], sizes = [8, 8], strides = [1, 1]} : vector<8x32xbf16> to vector<8x8xbf16>
    %39 = vector.extract_strided_slice %10 {offsets = [0, 8], sizes = [8, 8], strides = [1, 1]} : vector<8x32xbf16> to vector<8x8xbf16>
    %40 = vector.extract_strided_slice %11 {offsets = [0, 8], sizes = [8, 8], strides = [1, 1]} : vector<8x32xbf16> to vector<8x8xbf16>
    %cst_20 = arith.constant dense<0.000000e+00> : vector<8x8xf32>
    %41 = tpu.matmul %38, %39, %cst_20 {dimension_numbers = #tpu.dot_dimension_numbers<[1], [1], [0], [0], [0, 0, 1, 0], [], []>} : vector<8x8xbf16>, vector<8x8xbf16>, vector<8x8xf32> -> vector<8x8xf32>
    %42 = arith.addf %41, %14 : vector<8x8xf32>
    %cst_21 = arith.constant dense<0xFF800000> : vector<8xf32>
    %43 = vector.multi_reduction <maximumf>, %42, %cst_21 [1] : vector<8x8xf32> to vector<8xf32>
    %44 = vector.shape_cast %43 : vector<8xf32> to vector<8x1xf32>
    %45 = vector.broadcast %44 : vector<8x1xf32> to vector<8x8xf32>
    %46 = arith.subf %42, %45 : vector<8x8xf32>
    %47 = math.exp %46 : vector<8x8xf32>
    %cst_22 = arith.constant dense<0.000000e+00> : vector<8xf32>
    %48 = vector.multi_reduction <add>, %47, %cst_22 [1] : vector<8x8xf32> to vector<8xf32>
    %49 = vector.shape_cast %48 : vector<8xf32> to vector<8x1xf32>
    %50 = arith.truncf %47 : vector<8x8xf32> to vector<8x8xbf16>
    %cst_23 = arith.constant dense<0.000000e+00> : vector<8x8xf32>
    %51 = tpu.matmul %50, %40, %cst_23 {dimension_numbers = #tpu.dot_dimension_numbers<[1], [0], [0], [1], [0, 0, 1, 1], [], []>} : vector<8x8xbf16>, vector<8x8xbf16>, vector<8x8xf32> -> vector<8x8xf32>
    %52 = tpu.reciprocal %49 {approx = true} : vector<8x1xf32> -> vector<8x1xf32>
    %53 = vector.broadcast %52 : vector<8x1xf32> to vector<8x8xf32>
    %54 = arith.mulf %51, %53 : vector<8x8xf32>
    %c0_24 = arith.constant 0 : index
    %c0_25 = arith.constant 0 : index
    %55 = vector.load %arg13[%c0_24, %c0_25] : memref<8x32xf32, #tpu.memory_space<vmem>>, vector<8x32xf32>
    %56 = arith.truncf %54 : vector<8x8xf32> to vector<8x8xbf16>
    %c8 = arith.constant 8 : index
    %c0_26 = arith.constant 0 : index
    %57 = vector.load %arg9[%c8, %c0_26] : memref<32x32xbf16, #tpu.memory_space<vmem>>, vector<8x32xbf16>
    %cst_27 = arith.constant dense<0.000000e+00> : vector<8x32xf32>
    %58 = tpu.matmul %56, %57, %cst_27 {dimension_numbers = #tpu.dot_dimension_numbers<[1], [0], [0], [1], [0, 0, 1, 1], [], []>} : vector<8x8xbf16>, vector<8x32xbf16>, vector<8x32xf32> -> vector<8x32xf32>
    %59 = arith.addf %55, %58 : vector<8x32xf32>
    %c0_28 = arith.constant 0 : index
    %c0_29 = arith.constant 0 : index
    %60 = vector.load %arg13[%c0_28, %c0_29] : memref<8x32xf32, #tpu.memory_space<vmem>>, vector<8x32xf32>
    tpu.vector_store %arg13[%c0_28, %c0_29], %59 {strides = array<i32>} : memref<8x32xf32, #tpu.memory_space<vmem>>, vector<8x32xf32>,
    %61 = vector.extract_strided_slice %12 {offsets = [0, 16], sizes = [8, 8], strides = [1, 1]} : vector<8x32xbf16> to vector<8x8xbf16>
    %62 = vector.extract_strided_slice %10 {offsets = [0, 16], sizes = [8, 8], strides = [1, 1]} : vector<8x32xbf16> to vector<8x8xbf16>
    %63 = vector.extract_strided_slice %11 {offsets = [0, 16], sizes = [8, 8], strides = [1, 1]} : vector<8x32xbf16> to vector<8x8xbf16>
    %cst_30 = arith.constant dense<0.000000e+00> : vector<8x8xf32>
    %64 = tpu.matmul %61, %62, %cst_30 {dimension_numbers = #tpu.dot_dimension_numbers<[1], [1], [0], [0], [0, 0, 1, 0], [], []>} : vector<8x8xbf16>, vector<8x8xbf16>, vector<8x8xf32> -> vector<8x8xf32>
    %65 = arith.addf %64, %14 : vector<8x8xf32>
    %cst_31 = arith.constant dense<0xFF800000> : vector<8xf32>
    %66 = vector.multi_reduction <maximumf>, %65, %cst_31 [1] : vector<8x8xf32> to vector<8xf32>
    %67 = vector.shape_cast %66 : vector<8xf32> to vector<8x1xf32>
    %68 = vector.broadcast %67 : vector<8x1xf32> to vector<8x8xf32>
    %69 = arith.subf %65, %68 : vector<8x8xf32>
    %70 = math.exp %69 : vector<8x8xf32>
    %cst_32 = arith.constant dense<0.000000e+00> : vector<8xf32>
    %71 = vector.multi_reduction <add>, %70, %cst_32 [1] : vector<8x8xf32> to vector<8xf32>
    %72 = vector.shape_cast %71 : vector<8xf32> to vector<8x1xf32>
    %73 = arith.truncf %70 : vector<8x8xf32> to vector<8x8xbf16>
    %cst_33 = arith.constant dense<0.000000e+00> : vector<8x8xf32>
    %74 = tpu.matmul %73, %63, %cst_33 {dimension_numbers = #tpu.dot_dimension_numbers<[1], [0], [0], [1], [0, 0, 1, 1], [], []>} : vector<8x8xbf16>, vector<8x8xbf16>, vector<8x8xf32> -> vector<8x8xf32>
    %75 = tpu.reciprocal %72 {approx = true} : vector<8x1xf32> -> vector<8x1xf32>
    %76 = vector.broadcast %75 : vector<8x1xf32> to vector<8x8xf32>
    %77 = arith.mulf %74, %76 : vector<8x8xf32>
    %c0_34 = arith.constant 0 : index
    %c0_35 = arith.constant 0 : index
    %78 = vector.load %arg13[%c0_34, %c0_35] : memref<8x32xf32, #tpu.memory_space<vmem>>, vector<8x32xf32>
    %79 = arith.truncf %77 : vector<8x8xf32> to vector<8x8xbf16>
    %c16 = arith.constant 16 : index
    %c0_36 = arith.constant 0 : index
    %80 = vector.load %arg9[%c16, %c0_36] : memref<32x32xbf16, #tpu.memory_space<vmem>>, vector<8x32xbf16>
    %cst_37 = arith.constant dense<0.000000e+00> : vector<8x32xf32>
    %81 = tpu.matmul %79, %80, %cst_37 {dimension_numbers = #tpu.dot_dimension_numbers<[1], [0], [0], [1], [0, 0, 1, 1], [], []>} : vector<8x8xbf16>, vector<8x32xbf16>, vector<8x32xf32> -> vector<8x32xf32>
    %82 = arith.addf %78, %81 : vector<8x32xf32>
    %c0_38 = arith.constant 0 : index
    %c0_39 = arith.constant 0 : index
    %83 = vector.load %arg13[%c0_38, %c0_39] : memref<8x32xf32, #tpu.memory_space<vmem>>, vector<8x32xf32>
    tpu.vector_store %arg13[%c0_38, %c0_39], %82 {strides = array<i32>} : memref<8x32xf32, #tpu.memory_space<vmem>>, vector<8x32xf32>,
    %84 = vector.extract_strided_slice %12 {offsets = [0, 24], sizes = [8, 8], strides = [1, 1]} : vector<8x32xbf16> to vector<8x8xbf16>
    %85 = vector.extract_strided_slice %10 {offsets = [0, 24], sizes = [8, 8], strides = [1, 1]} : vector<8x32xbf16> to vector<8x8xbf16>
    %86 = vector.extract_strided_slice %11 {offsets = [0, 24], sizes = [8, 8], strides = [1, 1]} : vector<8x32xbf16> to vector<8x8xbf16>
    %cst_40 = arith.constant dense<0.000000e+00> : vector<8x8xf32>
    %87 = tpu.matmul %84, %85, %cst_40 {dimension_numbers = #tpu.dot_dimension_numbers<[1], [1], [0], [0], [0, 0, 1, 0], [], []>} : vector<8x8xbf16>, vector<8x8xbf16>, vector<8x8xf32> -> vector<8x8xf32>
    %88 = arith.addf %87, %14 : vector<8x8xf32>
    %cst_41 = arith.constant dense<0xFF800000> : vector<8xf32>
    %89 = vector.multi_reduction <maximumf>, %88, %cst_41 [1] : vector<8x8xf32> to vector<8xf32>
    %90 = vector.shape_cast %89 : vector<8xf32> to vector<8x1xf32>
    %91 = vector.broadcast %90 : vector<8x1xf32> to vector<8x8xf32>
    %92 = arith.subf %88, %91 : vector<8x8xf32>
    %93 = math.exp %92 : vector<8x8xf32>
    %cst_42 = arith.constant dense<0.000000e+00> : vector<8xf32>
    %94 = vector.multi_reduction <add>, %93, %cst_42 [1] : vector<8x8xf32> to vector<8xf32>
    %95 = vector.shape_cast %94 : vector<8xf32> to vector<8x1xf32>
    %96 = arith.truncf %93 : vector<8x8xf32> to vector<8x8xbf16>
    %cst_43 = arith.constant dense<0.000000e+00> : vector<8x8xf32>
    %97 = tpu.matmul %96, %86, %cst_43 {dimension_numbers = #tpu.dot_dimension_numbers<[1], [0], [0], [1], [0, 0, 1, 1], [], []>} : vector<8x8xbf16>, vector<8x8xbf16>, vector<8x8xf32> -> vector<8x8xf32>
    %98 = tpu.reciprocal %95 {approx = true} : vector<8x1xf32> -> vector<8x1xf32>
    %99 = vector.broadcast %98 : vector<8x1xf32> to vector<8x8xf32>
    %100 = arith.mulf %97, %99 : vector<8x8xf32>
    %c0_44 = arith.constant 0 : index
    %c0_45 = arith.constant 0 : index
    %101 = vector.load %arg13[%c0_44, %c0_45] : memref<8x32xf32, #tpu.memory_space<vmem>>, vector<8x32xf32>
    %102 = arith.truncf %100 : vector<8x8xf32> to vector<8x8xbf16>
    %c24 = arith.constant 24 : index
    %c0_46 = arith.constant 0 : index
    %103 = vector.load %arg9[%c24, %c0_46] : memref<32x32xbf16, #tpu.memory_space<vmem>>, vector<8x32xbf16>
    %cst_47 = arith.constant dense<0.000000e+00> : vector<8x32xf32>
    %104 = tpu.matmul %102, %103, %cst_47 {dimension_numbers = #tpu.dot_dimension_numbers<[1], [0], [0], [1], [0, 0, 1, 1], [], []>} : vector<8x8xbf16>, vector<8x32xbf16>, vector<8x32xf32> -> vector<8x32xf32>
    %105 = arith.addf %101, %104 : vector<8x32xf32>
    %c0_48 = arith.constant 0 : index
    %c0_49 = arith.constant 0 : index
    %106 = vector.load %arg13[%c0_48, %c0_49] : memref<8x32xf32, #tpu.memory_space<vmem>>, vector<8x32xf32>
    tpu.vector_store %arg13[%c0_48, %c0_49], %105 {strides = array<i32>} : memref<8x32xf32, #tpu.memory_space<vmem>>, vector<8x32xf32>,
    %c0_i32_50 = arith.constant 0 : i32
    %107 = arith.cmpi eq, %arg2, %c0_i32_50 : i32
    %108 = arith.extui %107 : i1 to i32
    %c0_i32_51 = arith.constant 0 : i32
    %109 = arith.cmpi ne, %108, %c0_i32_51 : i32
    scf.if %109 {
      %c0_52 = arith.constant 0 : index
      %c0_53 = arith.constant 0 : index
      %110 = vector.load %arg13[%c0_52, %c0_53] : memref<8x32xf32, #tpu.memory_space<vmem>>, vector<8x32xf32>
      %c0_54 = arith.constant 0 : index
      %c0_55 = arith.constant 0 : index
      %c0_56 = arith.constant 0 : index
      %111 = vector.load %arg11[%c0_54, %c0_55, %c0_56] : memref<1x8x32xf32, #tpu.memory_space<vmem>>, vector<1x8x32xf32>
      %112 = vector.shape_cast %111 : vector<1x8x32xf32> to vector<8x32xf32>
      %113 = vector.shape_cast %110 : vector<8x32xf32> to vector<1x8x32xf32>
      tpu.vector_store %arg11[%c0_54, %c0_55, %c0_56], %113 {strides = array<i32>} : memref<1x8x32xf32, #tpu.memory_space<vmem>>, vector<1x8x32xf32>,
    } else {
    }
    return
  }
  func.func @transform_0(%arg0: i32, %arg1: i32, %arg2: i32) -> (i32, i32, i32) {
    %c0_i32 = arith.constant 0 : i32
    %c0_i32_0 = arith.constant 0 : i32
    %c0_i32_1 = arith.constant 0 : i32
    return %arg0, %c0_i32, %c0_i32_0 : i32, i32, i32
  }
  func.func @transform_1(%arg0: i32, %arg1: i32, %arg2: i32) -> (i32, i32, i32) {
    %c0_i32 = arith.constant 0 : i32
    %c0_i32_0 = arith.constant 0 : i32
    %c0_i32_1 = arith.constant 0 : i32
    return %c0_i32, %arg1, %c0_i32_0 : i32, i32, i32
  }
  func.func @transform_2(%arg0: i32, %arg1: i32, %arg2: i32) -> (i32, i32) {
    %c0_i32 = arith.constant 0 : i32
    %c0_i32_0 = arith.constant 0 : i32
    %c0_i32_1 = arith.constant 0 : i32
    return %c0_i32, %c0_i32_0 : i32, i32
  }
  func.func @transform_3(%arg0: i32, %arg1: i32, %arg2: i32) -> (i32, i32) {
    %c0_i32 = arith.constant 0 : i32
    %c0_i32_0 = arith.constant 0 : i32
    %c0_i32_1 = arith.constant 0 : i32
    return %c0_i32, %c0_i32_0 : i32, i32
  }
  func.func @transform_4(%arg0: i32, %arg1: i32, %arg2: i32) -> (i32, i32) {
    %c0_i32 = arith.constant 0 : i32
    %c0_i32_0 = arith.constant 0 : i32
    return %c0_i32, %arg2 : i32, i32
  }
  func.func @transform_5(%arg0: i32, %arg1: i32, %arg2: i32) -> (i32, i32) {
    %c0_i32 = arith.constant 0 : i32
    %c0_i32_0 = arith.constant 0 : i32
    return %c0_i32, %arg2 : i32, i32
  }
  func.func @transform_6(%arg0: i32, %arg1: i32, %arg2: i32) -> (i32, i32) {
    %c0_i32 = arith.constant 0 : i32
    %c0_i32_0 = arith.constant 0 : i32
    return %arg2, %c0_i32 : i32, i32
  }
  func.func @transform_7(%arg0: i32, %arg1: i32, %arg2: i32) -> (i32, i32) {
    %c0_i32 = arith.constant 0 : i32
    %c0_i32_0 = arith.constant 0 : i32
    %c0_i32_1 = arith.constant 0 : i32
    return %c0_i32, %c0_i32_0 : i32, i32
  }
  func.func @transform_8(%arg0: i32, %arg1: i32, %arg2: i32) -> (i32, i32, i32) {
    %c0_i32 = arith.constant 0 : i32
    %c0_i32_0 = arith.constant 0 : i32
    return %arg0, %arg1, %c0_i32 : i32, i32, i32
  }
}

</mosaic_0001>

<llo_original>
// kernel: tpu_custom_call.1
$region0: #{tpu_custom_call.1}
  #allocation0 [shape = 'u32[]', space=smem, size = 0x4, offset = 0x4, fixed_abs, tag = 'smem constant byte address 0x4 - core index']
  #allocation1 [shape = 'u32[144,128]{1,0:T(1,128)}', space=vmem, size = 0x12000, scoped, tag = 'internal scratch']
  #allocation2 [shape = 'bf16[8,32]{1,0:T(8,128)(2,1)}', space=vmem, size = 0x800, scoped, tag = 'scratch operand']
  #allocation3 [shape = 'f32[8,32]{1,0:T(8,128)}', space=vmem, size = 0x1000, scoped, tag = 'scratch operand']
  %s0 = inlined_call_operand.hbm [shape: f32[2,8,32], index: 0, kind: input, shape index: {}]
  %s1 = inlined_call_operand.hbm [shape: f32[1,8,8], index: 1, kind: input, shape index: {}]
  %s2 = inlined_call_operand.vmem [shape: f32[1,32], index: 2, kind: input, shape index: {}]
  %s3 = inlined_call_operand.vmem [shape: f32[1,32], index: 3, kind: input, shape index: {}]
  %s4 = inlined_call_operand.hbm [shape: bf16[32,96], index: 4, kind: input, shape index: {}]
  %s5 = inlined_call_operand.vmem [shape: f32[1,96], index: 5, kind: input, shape index: {}]
  %s6 = inlined_call_operand.hbm [shape: bf16[32,32], index: 6, kind: input, shape index: {}]
  %s7 = inlined_call_operand.vmem [shape: f32[1,32], index: 7, kind: input, shape index: {}]
  %s8 = inlined_call_operand.hbm [shape: f32[2,8,32], index: 8, kind: output, shape index: {}]
  %s9 = sld [smem:[#allocation0]]
  $region89: #{tpu_custom_call.1} parent=0
    _
  %s11 = ssub.s32 1, %s9
  %s12 = scalar_select 0, %s11, %s9
  $region1: #{tpu_custom_call.1} parent=0
    #allocation4 [shape = 'u8[8192]{0}', space=vmem, size = 0x2000, scoped, tag = 'input window, operand 0']
    #allocation5 [shape = 's32[2]{0}', space=sflag, size = 0x8, scoped, tag = 'scoped memory for tpu_custom_call.1']
    #allocation6 [shape = 's32[2]{0}', space=sflag, size = 0x8, scoped, tag = 'scoped memory for tpu_custom_call.1']
    #allocation7 [shape = 'u8[4096]{0}', space=vmem, size = 0x1000, scoped, tag = 'input window, operand 1, single buffered']
    #allocation8 [shape = 's32[1]{0}', space=sflag, size = 0x4, scoped, tag = 'scoped memory for tpu_custom_call.1']
    #allocation9 [shape = 'u8[8192]{0}', space=vmem, size = 0x2000, scoped, tag = 'input window, operand 4, single buffered']
    #allocation10 [shape = 'u8[8192]{0}', space=vmem, size = 0x2000, scoped, tag = 'input window, operand 6, single buffered']
    #allocation11 [shape = 's32[1]{0}', space=sflag, size = 0x4, scoped, tag = 'scoped memory for tpu_custom_call.1']
    #allocation12 [shape = 'u8[8192]{0}', space=vmem, size = 0x2000, scoped, tag = 'output window, operand 0']
    %13 = vsyncpa [#allocation5], 0
    %s14 = scalar_lea.sflag [#allocation5], 1
    %15 = vsyncpa %s14, 0
    %16 = vsyncpa [#allocation8], 0
    %17 = vsyncpa [#allocation11], 0
    %18 = vsyncpa [#allocation6], 0
    %s19 = scalar_lea.sflag [#allocation6], 1
    %20 = vsyncpa %s19, 0
    loop: start=0, step=1, limit=4
    $region2: #{tpu_custom_call.1} parent=1 // loop_pre_header
      _
    $region3: #{tpu_custom_call.1} parent=1 // loop_header
      %s22 = sphi 0, %s26
      %p23 = scmp.ge.s32.totalorder %s22, 4
      %s29 = sphi 0, %s48
      %s30 = sphi 0, %s44
      %s31 = sphi 0, %s40
      %s32 = sphi 0, %s29
      %s33 = sphi 0, %s30
      %s34 = sphi 0, %s31
      %s35 = sphi 0, %s32
      %s36 = sphi 0, %s33
      %s37 = sphi 0, %s34
      %s51 = sphi 0, %s53
      %s54 = sphi 0, %s51
      %s55 = sphi 0, %s54
      %s71 = sphi 0, %s55
      %s77 = sphi 0, %s79
      %s80 = sphi 0, %s77
      %s81 = sphi 0, %s80
      %s97 = sphi 0, %s81
      %s101 = sphi 0, %s101
      %s103 = sphi 0, %s101
      %s104 = sphi 0, %s103
      %s118 = sphi 0, %s104
      %s122 = sphi 0, %s122
      %s124 = sphi 0, %s122
      %s125 = sphi 0, %s124
      %s139 = sphi 0, %s125
      %s145 = sphi 0, %s147
      %s148 = sphi 0, %s145
      %s149 = sphi 0, %s148
      %s165 = sphi 0, %s149
      %s171 = sphi 0, %s173
      %s174 = sphi 0, %s171
      %s175 = sphi 0, %s174
      %s191 = sphi 0, %s175
      %s197 = sphi 0, %s199
      %s200 = sphi 0, %s197
      %s201 = sphi 0, %s200
      %s217 = sphi 0, %s201
      %s221 = sphi 0, %s221
      %s223 = sphi 0, %s221
      %s224 = sphi 0, %s223
      %s238 = sphi 0, %s224
      %s246 = sphi 0, %s248
      %s249 = sphi 0, %s246
      %s250 = sphi 0, %s249
      %s266 = sphi 0, %s250
    $region4: #{tpu_custom_call.1} parent=1 // loop_header_branch
      %25 = sbr.rel (%p23) target = $region8
    $region5: #{tpu_custom_call.1} parent=1 // loop_body
      %s27 = ssub.s32 %s22, 1
      %s28 = ssub.s32 %s22, 2
      %s38 = sadd.s32 1, %s31
      %p39 = scmp.ge.s32.totalorder %s38, 1
      %s40 = scalar_select %p39, 0, %s38
      %s41 = sadd.s32 1, %s30
      %s42 = scalar_select %p39, %s41, %s30
      %p43 = scmp.ge.s32.totalorder %s42, 1
      %s44 = scalar_select %p43, 0, %s42
      %s45 = sadd.s32 1, %s29
      %s46 = scalar_select %p43, %s45, %s29
      %p47 = scmp.ge.s32.totalorder %s46, 2
      %s48 = scalar_select %p47, 0, %s46
      %s49 = ssub.s32 %s29, %s48
      %p50 = scmp.eq.s32.totalorder %s49, 0
      %s52 = sadd.s32 %s51, 1
      %s53 = scalar_select %p50, %s51, %s52
      %p56 = pneg %p50
      %p57 = scmp.eq.s32.totalorder %s22, 1
      %p58 = por %p56, %p57
      %p59 = scmp.ne.s32.totalorder %s51, %s54
      %p60 = scmp.eq.s32.totalorder %s22, 0
      %p61 = por %p59, %p60
      %p62 = scmp.ne.s32.totalorder %s51, %s54
      %p63 = scmp.eq.s32.totalorder %s27, 1
      %p64 = por %p62, %p63
      %p65 = scmp.ne.s32.totalorder %s54, %s55
      %p66 = scmp.eq.s32.totalorder %s27, 0
      %p67 = por %p65, %p66
      %p68 = scmp.ne.s32.totalorder %s54, %s55
      %p69 = scmp.eq.s32.totalorder %s28, 1
      %p70 = por %p68, %p69
      %p72 = scmp.ne.s32.totalorder %s55, %s71
      %p73 = scmp.eq.s32.totalorder %s28, 0
      %p74 = por %p72, %p73
      %s75 = ssub.s32 %s30, %s44
      %p76 = scmp.eq.s32.totalorder %s75, 0
      %s78 = sadd.s32 %s77, 1
      %s79 = scalar_select %p76, %s77, %s78
      %p82 = pneg %p76
      %p83 = scmp.eq.s32.totalorder %s22, 1
      %p84 = por %p82, %p83
      %p85 = scmp.ne.s32.totalorder %s77, %s80
      %p86 = scmp.eq.s32.totalorder %s22, 0
      %p87 = por %p85, %p86
      %p88 = scmp.ne.s32.totalorder %s77, %s80
      %p89 = scmp.eq.s32.totalorder %s27, 1
      %p90 = por %p88, %p89
      %p91 = scmp.ne.s32.totalorder %s80, %s81
      %p92 = scmp.eq.s32.totalorder %s27, 0
      %p93 = por %p91, %p92
      %p94 = scmp.ne.s32.totalorder %s80, %s81
      %p95 = scmp.eq.s32.totalorder %s28, 1
      %p96 = por %p94, %p95
      %p98 = scmp.ne.s32.totalorder %s81, %s97
      %p99 = scmp.eq.s32.totalorder %s28, 0
      %p100 = por %p98, %p99
      %s102 = sadd.s32 %s101, 1
      %p105 = scmp.eq.s32.totalorder %s22, 1
      %p106 = scmp.ne.s32.totalorder %s101, %s103
      %p107 = scmp.eq.s32.totalorder %s22, 0
      %p108 = por %p106, %p107
      %p109 = scmp.ne.s32.totalorder %s101, %s103
      %p110 = scmp.eq.s32.totalorder %s27, 1
      %p111 = por %p109, %p110
      %p112 = scmp.ne.s32.totalorder %s103, %s104
      %p113 = scmp.eq.s32.totalorder %s27, 0
      %p114 = por %p112, %p113
      %p115 = scmp.ne.s32.totalorder %s103, %s104
      %p116 = scmp.eq.s32.totalorder %s28, 1
      %p117 = por %p115, %p116
      %p119 = scmp.ne.s32.totalorder %s104, %s118
      %p120 = scmp.eq.s32.totalorder %s28, 0
      %p121 = por %p119, %p120
      %s123 = sadd.s32 %s122, 1
      %p126 = scmp.eq.s32.totalorder %s22, 1
      %p127 = scmp.ne.s32.totalorder %s122, %s124
      %p128 = scmp.eq.s32.totalorder %s22, 0
      %p129 = por %p127, %p128
      %p130 = scmp.ne.s32.totalorder %s122, %s124
      %p131 = scmp.eq.s32.totalorder %s27, 1
      %p132 = por %p130, %p131
      %p133 = scmp.ne.s32.totalorder %s124, %s125
      %p134 = scmp.eq.s32.totalorder %s27, 0
      %p135 = por %p133, %p134
      %p136 = scmp.ne.s32.totalorder %s124, %s125
      %p137 = scmp.eq.s32.totalorder %s28, 1
      %p138 = por %p136, %p137
      %p140 = scmp.ne.s32.totalorder %s125, %s139
      %p141 = scmp.eq.s32.totalorder %s28, 0
      %p142 = por %p140, %p141
      %s143 = ssub.s32 %s31, %s40
      %p144 = scmp.eq.s32.totalorder %s143, 0
      %s146 = sadd.s32 %s145, 1
      %s147 = scalar_select %p144, %s145, %s146
      %p150 = pneg %p144
      %p151 = scmp.eq.s32.totalorder %s22, 1
      %p152 = por %p150, %p151
      %p153 = scmp.ne.s32.totalorder %s145, %s148
      %p154 = scmp.eq.s32.totalorder %s22, 0
      %p155 = por %p153, %p154
      %p156 = scmp.ne.s32.totalorder %s145, %s148
      %p157 = scmp.eq.s32.totalorder %s27, 1
      %p158 = por %p156, %p157
      %p159 = scmp.ne.s32.totalorder %s148, %s149
      %p160 = scmp.eq.s32.totalorder %s27, 0
      %p161 = por %p159, %p160
      %p162 = scmp.ne.s32.totalorder %s148, %s149
      %p163 = scmp.eq.s32.totalorder %s28, 1
      %p164 = por %p162, %p163
      %p166 = scmp.ne.s32.totalorder %s149, %s165
      %p167 = scmp.eq.s32.totalorder %s28, 0
      %p168 = por %p166, %p167
      %s169 = ssub.s32 %s31, %s40
      %p170 = scmp.eq.s32.totalorder %s169, 0
      %s172 = sadd.s32 %s171, 1
      %s173 = scalar_select %p170, %s171, %s172
      %p176 = pneg %p170
      %p177 = scmp.eq.s32.totalorder %s22, 1
      %p178 = por %p176, %p177
      %p179 = scmp.ne.s32.totalorder %s171, %s174
      %p180 = scmp.eq.s32.totalorder %s22, 0
      %p181 = por %p179, %p180
      %p182 = scmp.ne.s32.totalorder %s171, %s174
      %p183 = scmp.eq.s32.totalorder %s27, 1
      %p184 = por %p182, %p183
      %p185 = scmp.ne.s32.totalorder %s174, %s175
      %p186 = scmp.eq.s32.totalorder %s27, 0
      %p187 = por %p185, %p186
      %p188 = scmp.ne.s32.totalorder %s174, %s175
      %p189 = scmp.eq.s32.totalorder %s28, 1
      %p190 = por %p188, %p189
      %p192 = scmp.ne.s32.totalorder %s175, %s191
      %p193 = scmp.eq.s32.totalorder %s28, 0
      %p194 = por %p192, %p193
      %s195 = ssub.s32 %s31, %s40
      %p196 = scmp.eq.s32.totalorder %s195, 0
      %s198 = sadd.s32 %s197, 1
      %s199 = scalar_select %p196, %s197, %s198
      %p202 = pneg %p196
      %p203 = scmp.eq.s32.totalorder %s22, 1
      %p204 = por %p202, %p203
      %p205 = scmp.ne.s32.totalorder %s197, %s200
      %p206 = scmp.eq.s32.totalorder %s22, 0
      %p207 = por %p205, %p206
      %p208 = scmp.ne.s32.totalorder %s197, %s200
      %p209 = scmp.eq.s32.totalorder %s27, 1
      %p210 = por %p208, %p209
      %p211 = scmp.ne.s32.totalorder %s200, %s201
      %p212 = scmp.eq.s32.totalorder %s27, 0
      %p213 = por %p211, %p212
      %p214 = scmp.ne.s32.totalorder %s200, %s201
      %p215 = scmp.eq.s32.totalorder %s28, 1
      %p216 = por %p214, %p215
      %p218 = scmp.ne.s32.totalorder %s201, %s217
      %p219 = scmp.eq.s32.totalorder %s28, 0
      %p220 = por %p218, %p219
      %s222 = sadd.s32 %s221, 1
      %p225 = scmp.eq.s32.totalorder %s22, 1
      %p226 = scmp.ne.s32.totalorder %s221, %s223
      %p227 = scmp.eq.s32.totalorder %s22, 0
      %p228 = por %p226, %p227
      %p229 = scmp.ne.s32.totalorder %s221, %s223
      %p230 = scmp.eq.s32.totalorder %s27, 1
      %p231 = por %p229, %p230
      %p232 = scmp.ne.s32.totalorder %s223, %s224
      %p233 = scmp.eq.s32.totalorder %s27, 0
      %p234 = por %p232, %p233
      %p235 = scmp.ne.s32.totalorder %s223, %s224
      %p236 = scmp.eq.s32.totalorder %s28, 1
      %p237 = por %p235, %p236
      %p239 = scmp.ne.s32.totalorder %s224, %s238
      %p240 = scmp.eq.s32.totalorder %s28, 0
      %p241 = por %p239, %p240
      %s242 = ssub.s32 %s29, %s48
      %s243 = ssub.s32 %s30, %s44
      %s244 = sor.u32 %s242, %s243
      %p245 = scmp.eq.s32.totalorder %s244, 0
      %s247 = sadd.s32 %s246, 1
      %s248 = scalar_select %p245, %s246, %s247
      %p251 = pneg %p245
      %p252 = scmp.eq.s32.totalorder %s22, 1
      %p253 = por %p251, %p252
      %p254 = scmp.ne.s32.totalorder %s246, %s249
      %p255 = scmp.eq.s32.totalorder %s22, 0
      %p256 = por %p254, %p255
      %p257 = scmp.ne.s32.totalorder %s246, %s249
      %p258 = scmp.eq.s32.totalorder %s27, 1
      %p259 = por %p257, %p258
      %p260 = scmp.ne.s32.totalorder %s249, %s250
      %p261 = scmp.eq.s32.totalorder %s27, 0
      %p262 = por %p260, %p261
      %p263 = scmp.ne.s32.totalorder %s249, %s250
      %p264 = scmp.eq.s32.totalorder %s28, 1
      %p265 = por %p263, %p264
      %p267 = scmp.ne.s32.totalorder %s250, %s266
      %p268 = scmp.eq.s32.totalorder %s28, 0
      %p269 = por %p267, %p268
      %p270 = scmp.le.s32.totalorder 1, %s22
      %p271 = scmp.lt.s32.totalorder %s22, 3
      %p272 = pnand %p270, %p271
      %p273 = pneg %p272
      // Predicated region
      $region9: #{tpu_custom_call.1} parent=5 // pred_check
        _
      $region10: #{tpu_custom_call.1} parent=5 // pred_check_branch
        %275 = sbr.rel (%p272) target = $region12
      $region11: #{tpu_custom_call.1} parent=5 // pred_region
        %s276 = ssub.s32 %s22, 1
        // Predicated region
        $region13: #{tpu_custom_call.1} parent=11 // pred_check
          %p277 = pneg %p93
        $region14: #{tpu_custom_call.1} parent=11 // pred_check_branch
          %279 = sbr.rel (%p277) target = $region16
        $region15: #{tpu_custom_call.1} parent=11 // pred_region
          %s281 = ssub.s32 128, 128
          %282 = vsyncadd [#allocation8], %s281
          %s283 = smul.addr %s33, 128
          %s284 = scalar_lea.hbm %s1, %s283
          %s286 = sshll.u32 [#allocation7], 4
          %s287 = int_to_ptr.vmem [resolvable:$true] %s286
          %289 = dma.hbm_to_vmem [thread:$0]  %s284, 128, %s287, [#allocation8]
        $region16: #{tpu_custom_call.1} parent=11 // pred_fallthru
          _
        // Predicated region
        $region17: #{tpu_custom_call.1} parent=11 // pred_check
          %p290 = pneg %p114
        $region18: #{tpu_custom_call.1} parent=11 // pred_check_branch
          %292 = sbr.rel (%p290) target = $region20
        $region19: #{tpu_custom_call.1} parent=11 // pred_region
          _
        $region20: #{tpu_custom_call.1} parent=11 // pred_fallthru
          _
        // Predicated region
        $region21: #{tpu_custom_call.1} parent=11 // pred_check
          %p293 = pneg %p135
        $region22: #{tpu_custom_call.1} parent=11 // pred_check_branch
          %295 = sbr.rel (%p293) target = $region24
        $region23: #{tpu_custom_call.1} parent=11 // pred_region
          _
        $region24: #{tpu_custom_call.1} parent=11 // pred_fallthru
          _
        // Predicated region
        $region25: #{tpu_custom_call.1} parent=11 // pred_check
          %p296 = pneg %p161
        $region26: #{tpu_custom_call.1} parent=11 // pred_check_branch
          %298 = sbr.rel (%p296) target = $region28
        $region27: #{tpu_custom_call.1} parent=11 // pred_region
          %s300 = ssub.s32 256, 256
          %301 = vsyncadd [#allocation8], %s300
          %s302 = smul.addr %s34, 64
          %s303 = scalar_lea.hbm %s4, %s302
          %s304 = sshll.u32 [#allocation9], 4
          %s305 = int_to_ptr.vmem [resolvable:$true] %s304
          %310 = dma.hbm_to_vmem [thread:$0]  %s303, 256, %s305, [#allocation8], 64, 64, 4
        $region28: #{tpu_custom_call.1} parent=11 // pred_fallthru
          _
        // Predicated region
        $region29: #{tpu_custom_call.1} parent=11 // pred_check
          %p311 = pneg %p187
        $region30: #{tpu_custom_call.1} parent=11 // pred_check_branch
          %313 = sbr.rel (%p311) target = $region32
        $region31: #{tpu_custom_call.1} parent=11 // pred_region
          %p314 = scmp.lt.s32.totalorder %s34, 0
          %s315 = scalar_select %p314, %s34, 0
          %s316 = scalar_lea.vmem %s5, %s315
        $region32: #{tpu_custom_call.1} parent=11 // pred_fallthru
          _
        // Predicated region
        $region33: #{tpu_custom_call.1} parent=11 // pred_check
          %p317 = pneg %p213
        $region34: #{tpu_custom_call.1} parent=11 // pred_check_branch
          %319 = sbr.rel (%p317) target = $region36
        $region35: #{tpu_custom_call.1} parent=11 // pred_region
          %s320 = smul.u32 4, %s34
          %s322 = ssub.s32 256, 256
          %323 = vsyncadd [#allocation11], %s322
          %s324 = smul.addr %s320, 64
          %s325 = scalar_lea.hbm %s6, %s324
          %s326 = sshll.u32 [#allocation10], 4
          %s327 = int_to_ptr.vmem [resolvable:$true] %s326
          %332 = dma.hbm_to_vmem [thread:$0]  %s325, 256, %s327, [#allocation11], 64, 64, 4
        $region36: #{tpu_custom_call.1} parent=11 // pred_fallthru
          _
        // Predicated region
        $region37: #{tpu_custom_call.1} parent=11 // pred_check
          %p333 = pneg %p234
        $region38: #{tpu_custom_call.1} parent=11 // pred_check_branch
          %335 = sbr.rel (%p333) target = $region40
        $region39: #{tpu_custom_call.1} parent=11 // pred_region
          _
        $region40: #{tpu_custom_call.1} parent=11 // pred_fallthru
          _
      $region12: #{tpu_custom_call.1} parent=5 // pred_fallthru
        _
      %p336 = scmp.lt.s32.totalorder %s22, 2
      // Predicated region
      $region41: #{tpu_custom_call.1} parent=5 // pred_check
        %p337 = pneg %p336
      $region42: #{tpu_custom_call.1} parent=5 // pred_check_branch
        %339 = sbr.rel (%p337) target = $region44
      $region43: #{tpu_custom_call.1} parent=5 // pred_region
        // Predicated region
        $region45: #{tpu_custom_call.1} parent=43 // pred_check
          %p340 = pneg %p61
        $region46: #{tpu_custom_call.1} parent=43 // pred_check_branch
          %342 = sbr.rel (%p340) target = $region48
        $region47: #{tpu_custom_call.1} parent=43 // pred_region
          %s343 = sand.u32 %s51, 1
          %s344 = scalar_lea.sflag [#allocation5], %s343
          %s345 = sand.u32 %s51, 1
          %s346 = smul.addr %s345, 8
          %s347 = scalar_lea.vmem [#allocation4], %s346
          %s349 = ssub.s32 128, 128
          %350 = vsyncadd %s344, %s349
          %s351 = smul.addr %s29, 128
          %s352 = scalar_lea.hbm %s0, %s351
          %s354 = sshll.u32 %s347, 4
          %s355 = int_to_ptr.vmem [resolvable:$true] %s354
          %357 = dma.hbm_to_vmem [thread:$0]  %s352, 128, %s355, %s344
        $region48: #{tpu_custom_call.1} parent=43 // pred_fallthru
          _
      $region44: #{tpu_custom_call.1} parent=5 // pred_fallthru
        _
      %p358 = scmp.le.s32.totalorder 1, %s22
      %p359 = scmp.lt.s32.totalorder %s22, 3
      %p360 = pnand %p358, %p359
      %p361 = pneg %p360
      // Predicated region
      $region49: #{tpu_custom_call.1} parent=5 // pred_check
        _
      $region50: #{tpu_custom_call.1} parent=5 // pred_check_branch
        %363 = sbr.rel (%p360) target = $region52
      $region51: #{tpu_custom_call.1} parent=5 // pred_region
        %s364 = ssub.s32 %s22, 1
        %s365 = sand.u32 %s54, 1
        %s366 = scalar_lea.sflag [#allocation5], %s365
        %s367 = sand.u32 %s54, 1
        %s368 = smul.addr %s367, 8
        %s369 = scalar_lea.vmem [#allocation4], %s368
        // Predicated region
        $region53: #{tpu_custom_call.1} parent=51 // pred_check
          %p370 = pneg %p67
        $region54: #{tpu_custom_call.1} parent=51 // pred_check_branch
          %372 = sbr.rel (%p370) target = $region56
        $region55: #{tpu_custom_call.1} parent=51 // pred_region
          %373 = dma.done %s366, 128
        $region56: #{tpu_custom_call.1} parent=51 // pred_fallthru
          _
        // Predicated region
        $region57: #{tpu_custom_call.1} parent=51 // pred_check
          %p374 = pneg %p93
        $region58: #{tpu_custom_call.1} parent=51 // pred_check_branch
          %376 = sbr.rel (%p374) target = $region60
        $region59: #{tpu_custom_call.1} parent=51 // pred_region
          %377 = dma.done [#allocation8], 128
        $region60: #{tpu_custom_call.1} parent=51 // pred_fallthru
          _
        // Predicated region
        $region61: #{tpu_custom_call.1} parent=51 // pred_check
          %p378 = pneg %p161
        $region62: #{tpu_custom_call.1} parent=51 // pred_check_branch
          %380 = sbr.rel (%p378) target = $region64
        $region63: #{tpu_custom_call.1} parent=51 // pred_region
          %381 = dma.done [#allocation8], 256
        $region64: #{tpu_custom_call.1} parent=51 // pred_fallthru
          _
        // Predicated region
        $region65: #{tpu_custom_call.1} parent=51 // pred_check
          %p382 = pneg %p213
        $region66: #{tpu_custom_call.1} parent=51 // pred_check_branch
          %384 = sbr.rel (%p382) target = $region68
        $region67: #{tpu_custom_call.1} parent=51 // pred_region
          %385 = dma.done [#allocation11], 256
        $region68: #{tpu_custom_call.1} parent=51 // pred_fallthru
          _
        %s386 = sand.u32 %s54, 1
        %s387 = scalar_lea.sflag [#allocation5], %s386
        %s388 = sand.u32 %s54, 1
        %s389 = smul.addr %s388, 8
        %s390 = scalar_lea.vmem [#allocation4], %s389
        %p391 = pneg %p67
        %p392 = pneg %p64
        %p393 = pneg %p93
        %p394 = pneg %p90
        %p395 = pneg %p114
        %p396 = pneg %p111
        %p397 = pneg %p135
        %p398 = pneg %p132
        %p399 = pneg %p161
        %p400 = pneg %p158
        %p401 = scmp.lt.s32.totalorder %s34, 0
        %s402 = scalar_select %p401, %s34, 0
        %s403 = scalar_lea.vmem %s5, %s402
        %p404 = pneg %p187
        %p405 = pneg %p184
        %p406 = pneg %p213
        %p407 = pneg %p210
        %p408 = pneg %p234
        %p409 = pneg %p231
        %p410 = pneg %p262
        %p411 = pneg %p259
        %s412 = sand.u32 %s249, 1
        %s413 = scalar_lea.sflag [#allocation6], %s412
        %s414 = sand.u32 %s249, 1
        %s415 = smul.addr %s414, 8
        %s416 = scalar_lea.vmem [#allocation12], %s415
        %p417 = scmp.lt.s32.totalorder %s34, 0
        %s418 = scalar_select %p417, %s34, 0
        %s419 = scalar_lea.vmem %s5, %s418
        %s420 = smul.u32 4, %s34
        %p422 = scmp.eq.s32.totalorder %s34, 0
        // Predicated region
        $region69: #{tpu_custom_call.1} parent=51 // pred_check
          %p423 = pneg %p422
        $region70: #{tpu_custom_call.1} parent=51 // pred_check_branch
          %425 = sbr.rel (%p423) target = $region72
        $region71: #{tpu_custom_call.1} parent=51 // pred_region
          %v426 = vld [vmem:[%s369] sm:$0xff]
          %v427 = vld [vmem:[%s2] sm:$0x1]
          %v428 = vld [vmem:[%s3] sm:$0x1]
          %vm429 = vcmask 261120
          %v430 = vsel %vm429, %v426, 0.0
          %431 = vadd.xlane.f32.xlu0 %v430
          %v432 = vpop.xlane.xlu0 %431
          %v433 = vrcp.pop 32.0
          %v434 = vmul.f32 %v432, %v433
          %v435 = vsub.f32 %v426, %v434
          %v436 = vmul.f32 %v435, %v435
          %v437 = vsel %vm429, %v436, 0.0
          %438 = vadd.xlane.f32.xlu0 %v437
          %v439 = vpop.xlane.xlu0 %438
          %v440 = vmul.f32 %v439, %v433
          %v441 = vadd.f32 %v440, 1e-05
          %v442 = vrsqrt.pop %v441
          %v443 = vmul.f32 %v435, %v442
          %v445 = vlaneseq
          %v446 = vshrl.u32 %v445, 7
          %v447 = vsub.s32 0, %v446
          %v448 = vrot.slane %v427, %v447
          %v450 = vmul.f32 %v443, %v448
          %v452 = vlaneseq
          %v453 = vshrl.u32 %v452, 7
          %v454 = vsub.s32 0, %v453
          %v455 = vrot.slane %v428, %v454
          %v457 = vadd.f32 %v450, %v455
          %v458 = vpack.c.bf16 %v457, %v457
          %vm459 = vcmask 257024
          %460 = vst.msk [vmem:[#allocation2] sm:$0xf] %vm459, %v458
          %v461 = vld [vmem:[%s369] sm:$0xff]
          %v462 = vld [vmem:[%s7] sm:$0x1]
          %v464 = vlaneseq
          %v465 = vshrl.u32 %v464, 7
          %v466 = vsub.s32 0, %v465
          %v467 = vrot.slane %v462, %v466
          %v469 = vadd.f32 %v461, %v467
          %470 = vst.msk [vmem:[#allocation3] sm:$0xff] %vm429, %v469
        $region72: #{tpu_custom_call.1} parent=51 // pred_fallthru
          _
        %v471 = vld [vmem:[#allocation2] sm:$0xf]
        %v472 = vld [vmem:[#allocation9] sm:$0xf]
        %v473 = vld [vmem:[#allocation9 + $0x4] sm:$0xf]
        %v474 = vld [vmem:[#allocation9 + $0x8] sm:$0xf]
        %v475 = vld [vmem:[#allocation9 + $0xc] sm:$0xf]
        %v476 = vld [vmem:[%s419] sm:$0x1]
        %v478 = vlaneseq
        %v479 = vshrl.u32 %v478, 7
        %v480 = vsub.s32 0, %v479
        %v481 = vrot.slane %v476, %v480
        %v487 = vunpack.c.l.b16 %v472
        %v488 = vunpack.c.l.b16 %v473
        %v489 = vunpack.c.l.b16 %v474
        %v490 = vunpack.c.l.b16 %v475
        %v491 = vpack.c.b16 %v488, %v487
        %v492 = vpack.c.b16 %v490, %v489
        %vm495 = vcmask 261120
        %v497 = vsel %vm495, %v471, 0
        %499 = vmatprep.subr.bf16.mxu0 0
        %500 = vmatpush1.bf16.msra.mxu0 0
        %501 = vmatprep.subr.bf16.mxu0 0
        %502 = vmatpush1.bf16.msra.mxu0 0
        %503 = vmatprep.subr.bf16.mxu0 0
        %504 = vmatpush1.bf16.msra.mxu0 0
        %505 = vmatprep.subr.bf16.mxu0 0
        %506 = vmatpush1.bf16.msra.mxu0 0
        %507 = vmatprep.subr.bf16.mxu0 0
        %508 = vmatpush1.bf16.msra.mxu0 0
        %509 = vmatprep.subr.bf16.mxu0 0
        %510 = vmatpush1.bf16.msra.mxu0 0
        %511 = vmatprep.subr.bf16.mxu0 0
        %512 = vmatpush1.bf16.msra.mxu0 %v492
        %513 = vmatprep.subr.bf16.mxu0 0
        %514 = vmatpush1.bf16.msra.mxu0 %v491
        %515 = vmatprep.subr.bf16.mxu0 0
        %516 = vmatpush2.bf16.msra.mxu0 0
        %517 = vmatprep.subr.bf16.mxu0 0
        %518 = vmatpush2.bf16.msra.mxu0 0
        %519 = vmatprep.subr.bf16.mxu0 0
        %520 = vmatpush2.bf16.msra.mxu0 0
        %521 = vmatprep.subr.bf16.mxu0 0
        %522 = vmatpush2.bf16.msra.mxu0 0
        %523 = vmatprep.subr.bf16.mxu0 0
        %524 = vmatpush2.bf16.msra.mxu0 0
        %525 = vmatprep.subr.bf16.mxu0 0
        %526 = vmatpush2.bf16.msra.mxu0 0
        %527 = vmatprep.subr.bf16.mxu0 0
        %528 = vmatpush2.bf16.msra.mxu0 0
        %529 = vmatprep.subr.bf16.mxu0 0
        %530 = vmatpush2.bf16.msra.mxu0 0
        %531 = vmatprep.mubr.bf16.mxu0 0
        %532 = vmatmul.mubr.bf16.gmra.mxu0 %v497
        %v533 = vpop.f32.mrf.mxu0
        %v534 = vadd.f32 %v481, %v533
        %v535 = vpop.f32.mrf.mxu0
        %v536 = vpop.f32.mrf.mxu0
        %v537 = vpop.f32.mrf.mxu0
        %538 = vdwg.mxu0
        %v539 = vpack.c.bf16 %v534, %v534
        %v540 = vld [vmem:[#allocation7] sm:$0xff]
        %542 = vrot.lane.b32.xlu0 %v539, 96
        %v543 = vpop.permute.xlu0 %542
        %vm544 = vcmask 64512
        %v546 = vsel %vm544, %v539, 0
        %v549 = vsel %vm544, %v543, 0
        %551 = vmatprep.subr.bf16.mxu0 0
        %552 = vmatpush1.bf16.xpose.msra.mxu0 0
        %553 = vmatprep.subr.bf16.mxu0 0
        %554 = vmatpush1.bf16.xpose.msra.mxu0 0
        %555 = vmatprep.subr.bf16.mxu0 0
        %556 = vmatpush1.bf16.xpose.msra.mxu0 0
        %557 = vmatprep.subr.bf16.mxu0 0
        %558 = vmatpush1.bf16.xpose.msra.mxu0 0
        %559 = vmatprep.subr.bf16.mxu0 0
        %560 = vmatpush1.bf16.xpose.msra.mxu0 0
        %561 = vmatprep.subr.bf16.mxu0 0
        %562 = vmatpush1.bf16.xpose.msra.mxu0 0
        %563 = vmatprep.subr.bf16.mxu0 0
        %564 = vmatpush1.bf16.xpose.msra.mxu0 0
        %565 = vmatprep.subr.bf16.mxu0 0
        %566 = vmatpush1.bf16.xpose.msra.mxu0 %v549
        %567 = vmatprep.subr.bf16.mxu0 0
        %568 = vmatpush2.bf16.xpose.msra.mxu0 0
        %569 = vmatprep.subr.bf16.mxu0 0
        %570 = vmatpush2.bf16.xpose.msra.mxu0 0
        %571 = vmatprep.subr.bf16.mxu0 0
        %572 = vmatpush2.bf16.xpose.msra.mxu0 0
        %573 = vmatprep.subr.bf16.mxu0 0
        %574 = vmatpush2.bf16.xpose.msra.mxu0 0
        %575 = vmatprep.subr.bf16.mxu0 0
        %576 = vmatpush2.bf16.xpose.msra.mxu0 0
        %577 = vmatprep.subr.bf16.mxu0 0
        %578 = vmatpush2.bf16.xpose.msra.mxu0 0
        %579 = vmatprep.subr.bf16.mxu0 0
        %580 = vmatpush2.bf16.xpose.msra.mxu0 0
        %581 = vmatprep.subr.bf16.mxu0 0
        %582 = vmatpush2.bf16.xpose.msra.mxu0 0
        %583 = vmatprep.mubr.bf16.mxu0 0
        %584 = vmatmul.mubr.bf16.gmra.mxu0 %v546
        %v585 = vpop.f32.mrf.mxu0
        %v586 = vadd.f32 %v540, %v585
        %v587 = vpop.f32.mrf.mxu0
        %v588 = vpop.f32.mrf.mxu0
        %v589 = vpop.f32.mrf.mxu0
        %590 = vdwg.mxu0
        %v591 = vsel %vm544, %v586, -inf
        %592 = vmax.xlane.f32.xlu0 %v591
        %v593 = vpop.xlane.xlu0 %592
        %v594 = vsub.f32 %v586, %v593
        %v595 = vmul.f32 %v594, 1.442695
        %v596 = vpow.pop %v595
        %v597 = vsel %vm544, %v596, 0.0
        %598 = vadd.xlane.f32.xlu0 %v597
        %v599 = vpop.xlane.xlu0 %598
        %v600 = vpack.c.bf16 %v596, %v596
        %601 = vrot.lane.b32.xlu0 %v539, 64
        %v602 = vpop.permute.xlu0 %601
        %v604 = vsel %vm544, %v600, 0
        %vm606 = vcmask 1043456
        %v608 = vsel %vm606, %v602, 0
        %610 = vmatprep.subr.bf16.mxu0 0
        %611 = vmatpush1.bf16.msra.mxu0 0
        %612 = vmatprep.subr.bf16.mxu0 0
        %613 = vmatpush1.bf16.msra.mxu0 0
        %614 = vmatprep.subr.bf16.mxu0 0
        %615 = vmatpush1.bf16.msra.mxu0 0
        %616 = vmatprep.subr.bf16.mxu0 0
        %617 = vmatpush1.bf16.msra.mxu0 0
        %618 = vmatprep.subr.bf16.mxu0 0
        %619 = vmatpush1.bf16.msra.mxu0 0
        %620 = vmatprep.subr.bf16.mxu0 0
        %621 = vmatpush1.bf16.msra.mxu0 0
        %622 = vmatprep.subr.bf16.mxu0 0
        %623 = vmatpush1.bf16.msra.mxu0 0
        %624 = vmatprep.subr.bf16.mxu0 0
        %625 = vmatpush1.bf16.msra.mxu0 %v608
        %626 = vmatprep.subr.bf16.mxu0 0
        %627 = vmatpush2.bf16.msra.mxu0 0
        %628 = vmatprep.subr.bf16.mxu0 0
        %629 = vmatpush2.bf16.msra.mxu0 0
        %630 = vmatprep.subr.bf16.mxu0 0
        %631 = vmatpush2.bf16.msra.mxu0 0
        %632 = vmatprep.subr.bf16.mxu0 0
        %633 = vmatpush2.bf16.msra.mxu0 0
        %634 = vmatprep.subr.bf16.mxu0 0
        %635 = vmatpush2.bf16.msra.mxu0 0
        %636 = vmatprep.subr.bf16.mxu0 0
        %637 = vmatpush2.bf16.msra.mxu0 0
        %638 = vmatprep.subr.bf16.mxu0 0
        %639 = vmatpush2.bf16.msra.mxu0 0
        %640 = vmatprep.subr.bf16.mxu0 0
        %641 = vmatpush2.bf16.msra.mxu0 0
        %642 = vmatprep.mubr.bf16.mxu0 0
        %643 = vmatmul.mubr.bf16.gmra.mxu0 %v604
        %v644 = vpop.f32.mrf.mxu0
        %v645 = vadd.f32 0.0, %v644
        %v646 = vpop.f32.mrf.mxu0
        %v647 = vpop.f32.mrf.mxu0
        %v648 = vpop.f32.mrf.mxu0
        %649 = vdwg.mxu0
        %v650 = vrcp.pop %v599
        %v651 = vmul.f32 %v645, %v650
        %v652 = vld [vmem:[#allocation3] sm:$0xff]
        %v653 = vpack.c.bf16 %v651, %v651
        %v654 = vld [vmem:[#allocation10] sm:$0xf]
        %v656 = vsel %vm544, %v653, 0
        %v659 = vsel %vm606, %v654, 0
        %661 = vmatprep.subr.bf16.mxu0 0
        %662 = vmatpush1.bf16.msra.mxu0 0
        %663 = vmatprep.subr.bf16.mxu0 0
        %664 = vmatpush1.bf16.msra.mxu0 0
        %665 = vmatprep.subr.bf16.mxu0 0
        %666 = vmatpush1.bf16.msra.mxu0 0
        %667 = vmatprep.subr.bf16.mxu0 0
        %668 = vmatpush1.bf16.msra.mxu0 0
        %669 = vmatprep.subr.bf16.mxu0 0
        %670 = vmatpush1.bf16.msra.mxu0 0
        %671 = vmatprep.subr.bf16.mxu0 0
        %672 = vmatpush1.bf16.msra.mxu0 0
        %673 = vmatprep.subr.bf16.mxu0 0
        %674 = vmatpush1.bf16.msra.mxu0 0
        %675 = vmatprep.subr.bf16.mxu0 0
        %676 = vmatpush1.bf16.msra.mxu0 %v659
        %677 = vmatprep.subr.bf16.mxu0 0
        %678 = vmatpush2.bf16.msra.mxu0 0
        %679 = vmatprep.subr.bf16.mxu0 0
        %680 = vmatpush2.bf16.msra.mxu0 0
        %681 = vmatprep.subr.bf16.mxu0 0
        %682 = vmatpush2.bf16.msra.mxu0 0
        %683 = vmatprep.subr.bf16.mxu0 0
        %684 = vmatpush2.bf16.msra.mxu0 0
        %685 = vmatprep.subr.bf16.mxu0 0
        %686 = vmatpush2.bf16.msra.mxu0 0
        %687 = vmatprep.subr.bf16.mxu0 0
        %688 = vmatpush2.bf16.msra.mxu0 0
        %689 = vmatprep.subr.bf16.mxu0 0
        %690 = vmatpush2.bf16.msra.mxu0 0
        %691 = vmatprep.subr.bf16.mxu0 0
        %692 = vmatpush2.bf16.msra.mxu0 0
        %693 = vmatprep.mubr.bf16.mxu0 0
        %694 = vmatmul.mubr.bf16.gmra.mxu0 %v656
        %v695 = vpop.f32.mrf.mxu0
        %v696 = vadd.f32 0.0, %v695
        %v697 = vpop.f32.mrf.mxu0
        %v698 = vpop.f32.mrf.mxu0
        %v699 = vpop.f32.mrf.mxu0
        %700 = vdwg.mxu0
        %v701 = vadd.f32 %v652, %v696
        %702 = vst.msk [vmem:[#allocation3] sm:$0xff] %vm495, %v701
        %703 = vrot.lane.b32.xlu0 %v539, 120
        %v704 = vpop.permute.xlu0 %703
        %705 = vrot.lane.b32.xlu0 %v539, 88
        %v706 = vpop.permute.xlu0 %705
        %v708 = vsel %vm544, %v704, 0
        %v711 = vsel %vm544, %v706, 0
        %713 = vmatprep.subr.bf16.mxu0 0
        %714 = vmatpush1.bf16.xpose.msra.mxu0 0
        %715 = vmatprep.subr.bf16.mxu0 0
        %716 = vmatpush1.bf16.xpose.msra.mxu0 0
        %717 = vmatprep.subr.bf16.mxu0 0
        %718 = vmatpush1.bf16.xpose.msra.mxu0 0
        %719 = vmatprep.subr.bf16.mxu0 0
        %720 = vmatpush1.bf16.xpose.msra.mxu0 0
        %721 = vmatprep.subr.bf16.mxu0 0
        %722 = vmatpush1.bf16.xpose.msra.mxu0 0
        %723 = vmatprep.subr.bf16.mxu0 0
        %724 = vmatpush1.bf16.xpose.msra.mxu0 0
        %725 = vmatprep.subr.bf16.mxu0 0
        %726 = vmatpush1.bf16.xpose.msra.mxu0 0
        %727 = vmatprep.subr.bf16.mxu0 0
        %728 = vmatpush1.bf16.xpose.msra.mxu0 %v711
        %729 = vmatprep.subr.bf16.mxu0 0
        %730 = vmatpush2.bf16.xpose.msra.mxu0 0
        %731 = vmatprep.subr.bf16.mxu0 0
        %732 = vmatpush2.bf16.xpose.msra.mxu0 0
        %733 = vmatprep.subr.bf16.mxu0 0
        %734 = vmatpush2.bf16.xpose.msra.mxu0 0
        %735 = vmatprep.subr.bf16.mxu0 0
        %736 = vmatpush2.bf16.xpose.msra.mxu0 0
        %737 = vmatprep.subr.bf16.mxu0 0
        %738 = vmatpush2.bf16.xpose.msra.mxu0 0
        %739 = vmatprep.subr.bf16.mxu0 0
        %740 = vmatpush2.bf16.xpose.msra.mxu0 0
        %741 = vmatprep.subr.bf16.mxu0 0
        %742 = vmatpush2.bf16.xpose.msra.mxu0 0
        %743 = vmatprep.subr.bf16.mxu0 0
        %744 = vmatpush2.bf16.xpose.msra.mxu0 0
        %745 = vmatprep.mubr.bf16.mxu0 0
        %746 = vmatmul.mubr.bf16.gmra.mxu0 %v708
        %v747 = vpop.f32.mrf.mxu0
        %v748 = vadd.f32 %v540, %v747
        %v749 = vpop.f32.mrf.mxu0
        %v750 = vpop.f32.mrf.mxu0
        %v751 = vpop.f32.mrf.mxu0
        %752 = vdwg.mxu0
        %v753 = vsel %vm544, %v748, -inf
        %754 = vmax.xlane.f32.xlu0 %v753
        %v755 = vpop.xlane.xlu0 %754
        %v756 = vsub.f32 %v748, %v755
        %v757 = vmul.f32 %v756, 1.442695
        %v758 = vpow.pop %v757
        %v759 = vsel %vm544, %v758, 0.0
        %760 = vadd.xlane.f32.xlu0 %v759
        %v761 = vpop.xlane.xlu0 %760
        %v762 = vpack.c.bf16 %v758, %v758
        %763 = vrot.lane.b32.xlu0 %v539, 56
        %v764 = vpop.permute.xlu0 %763
        %v766 = vsel %vm544, %v762, 0
        %v769 = vsel %vm606, %v764, 0
        %771 = vmatprep.subr.bf16.mxu0 0
        %772 = vmatpush1.bf16.msra.mxu0 0
        %773 = vmatprep.subr.bf16.mxu0 0
        %774 = vmatpush1.bf16.msra.mxu0 0
        %775 = vmatprep.subr.bf16.mxu0 0
        %776 = vmatpush1.bf16.msra.mxu0 0
        %777 = vmatprep.subr.bf16.mxu0 0
        %778 = vmatpush1.bf16.msra.mxu0 0
        %779 = vmatprep.subr.bf16.mxu0 0
        %780 = vmatpush1.bf16.msra.mxu0 0
        %781 = vmatprep.subr.bf16.mxu0 0
        %782 = vmatpush1.bf16.msra.mxu0 0
        %783 = vmatprep.subr.bf16.mxu0 0
        %784 = vmatpush1.bf16.msra.mxu0 0
        %785 = vmatprep.subr.bf16.mxu0 0
        %786 = vmatpush1.bf16.msra.mxu0 %v769
        %787 = vmatprep.subr.bf16.mxu0 0
        %788 = vmatpush2.bf16.msra.mxu0 0
        %789 = vmatprep.subr.bf16.mxu0 0
        %790 = vmatpush2.bf16.msra.mxu0 0
        %791 = vmatprep.subr.bf16.mxu0 0
        %792 = vmatpush2.bf16.msra.mxu0 0
        %793 = vmatprep.subr.bf16.mxu0 0
        %794 = vmatpush2.bf16.msra.mxu0 0
        %795 = vmatprep.subr.bf16.mxu0 0
        %796 = vmatpush2.bf16.msra.mxu0 0
        %797 = vmatprep.subr.bf16.mxu0 0
        %798 = vmatpush2.bf16.msra.mxu0 0
        %799 = vmatprep.subr.bf16.mxu0 0
        %800 = vmatpush2.bf16.msra.mxu0 0
        %801 = vmatprep.subr.bf16.mxu0 0
        %802 = vmatpush2.bf16.msra.mxu0 0
        %803 = vmatprep.mubr.bf16.mxu0 0
        %804 = vmatmul.mubr.bf16.gmra.mxu0 %v766
        %v805 = vpop.f32.mrf.mxu0
        %v806 = vadd.f32 0.0, %v805
        %v807 = vpop.f32.mrf.mxu0
        %v808 = vpop.f32.mrf.mxu0
        %v809 = vpop.f32.mrf.mxu0
        %810 = vdwg.mxu0
        %v811 = vrcp.pop %v761
        %v812 = vmul.f32 %v806, %v811
        %v813 = vld [vmem:[#allocation3] sm:$0xff]
        %v814 = vpack.c.bf16 %v812, %v812
        %v815 = vld [vmem:[#allocation10 + $0x4] sm:$0xf]
        %v817 = vsel %vm544, %v814, 0
        %v820 = vsel %vm606, %v815, 0
        %822 = vmatprep.subr.bf16.mxu0 0
        %823 = vmatpush1.bf16.msra.mxu0 0
        %824 = vmatprep.subr.bf16.mxu0 0
        %825 = vmatpush1.bf16.msra.mxu0 0
        %826 = vmatprep.subr.bf16.mxu0 0
        %827 = vmatpush1.bf16.msra.mxu0 0
        %828 = vmatprep.subr.bf16.mxu0 0
        %829 = vmatpush1.bf16.msra.mxu0 0
        %830 = vmatprep.subr.bf16.mxu0 0
        %831 = vmatpush1.bf16.msra.mxu0 0
        %832 = vmatprep.subr.bf16.mxu0 0
        %833 = vmatpush1.bf16.msra.mxu0 0
        %834 = vmatprep.subr.bf16.mxu0 0
        %835 = vmatpush1.bf16.msra.mxu0 0
        %836 = vmatprep.subr.bf16.mxu0 0
        %837 = vmatpush1.bf16.msra.mxu0 %v820
        %838 = vmatprep.subr.bf16.mxu0 0
        %839 = vmatpush2.bf16.msra.mxu0 0
        %840 = vmatprep.subr.bf16.mxu0 0
        %841 = vmatpush2.bf16.msra.mxu0 0
        %842 = vmatprep.subr.bf16.mxu0 0
        %843 = vmatpush2.bf16.msra.mxu0 0
        %844 = vmatprep.subr.bf16.mxu0 0
        %845 = vmatpush2.bf16.msra.mxu0 0
        %846 = vmatprep.subr.bf16.mxu0 0
        %847 = vmatpush2.bf16.msra.mxu0 0
        %848 = vmatprep.subr.bf16.mxu0 0
        %849 = vmatpush2.bf16.msra.mxu0 0
        %850 = vmatprep.subr.bf16.mxu0 0
        %851 = vmatpush2.bf16.msra.mxu0 0
        %852 = vmatprep.subr.bf16.mxu0 0
        %853 = vmatpush2.bf16.msra.mxu0 0
        %854 = vmatprep.mubr.bf16.mxu0 0
        %855 = vmatmul.mubr.bf16.gmra.mxu0 %v817
        %v856 = vpop.f32.mrf.mxu0
        %v857 = vadd.f32 0.0, %v856
        %v858 = vpop.f32.mrf.mxu0
        %v859 = vpop.f32.mrf.mxu0
        %v860 = vpop.f32.mrf.mxu0
        %861 = vdwg.mxu0
        %v862 = vadd.f32 %v813, %v857
        %863 = vst.msk [vmem:[#allocation3] sm:$0xff] %vm495, %v862
        %864 = vrot.lane.b32.xlu0 %v539, 112
        %v865 = vpop.permute.xlu0 %864
        %866 = vrot.lane.b32.xlu0 %v539, 80
        %v867 = vpop.permute.xlu0 %866
        %v869 = vsel %vm544, %v865, 0
        %v872 = vsel %vm544, %v867, 0
        %874 = vmatprep.subr.bf16.mxu0 0
        %875 = vmatpush1.bf16.xpose.msra.mxu0 0
        %876 = vmatprep.subr.bf16.mxu0 0
        %877 = vmatpush1.bf16.xpose.msra.mxu0 0
        %878 = vmatprep.subr.bf16.mxu0 0
        %879 = vmatpush1.bf16.xpose.msra.mxu0 0
        %880 = vmatprep.subr.bf16.mxu0 0
        %881 = vmatpush1.bf16.xpose.msra.mxu0 0
        %882 = vmatprep.subr.bf16.mxu0 0
        %883 = vmatpush1.bf16.xpose.msra.mxu0 0
        %884 = vmatprep.subr.bf16.mxu0 0
        %885 = vmatpush1.bf16.xpose.msra.mxu0 0
        %886 = vmatprep.subr.bf16.mxu0 0
        %887 = vmatpush1.bf16.xpose.msra.mxu0 0
        %888 = vmatprep.subr.bf16.mxu0 0
        %889 = vmatpush1.bf16.xpose.msra.mxu0 %v872
        %890 = vmatprep.subr.bf16.mxu0 0
        %891 = vmatpush2.bf16.xpose.msra.mxu0 0
        %892 = vmatprep.subr.bf16.mxu0 0
        %893 = vmatpush2.bf16.xpose.msra.mxu0 0
        %894 = vmatprep.subr.bf16.mxu0 0
        %895 = vmatpush2.bf16.xpose.msra.mxu0 0
        %896 = vmatprep.subr.bf16.mxu0 0
        %897 = vmatpush2.bf16.xpose.msra.mxu0 0
        %898 = vmatprep.subr.bf16.mxu0 0
        %899 = vmatpush2.bf16.xpose.msra.mxu0 0
        %900 = vmatprep.subr.bf16.mxu0 0
        %901 = vmatpush2.bf16.xpose.msra.mxu0 0
        %902 = vmatprep.subr.bf16.mxu0 0
        %903 = vmatpush2.bf16.xpose.msra.mxu0 0
        %904 = vmatprep.subr.bf16.mxu0 0
        %905 = vmatpush2.bf16.xpose.msra.mxu0 0
        %906 = vmatprep.mubr.bf16.mxu0 0
        %907 = vmatmul.mubr.bf16.gmra.mxu0 %v869
        %v908 = vpop.f32.mrf.mxu0
        %v909 = vadd.f32 %v540, %v908
        %v910 = vpop.f32.mrf.mxu0
        %v911 = vpop.f32.mrf.mxu0
        %v912 = vpop.f32.mrf.mxu0
        %913 = vdwg.mxu0
        %v914 = vsel %vm544, %v909, -inf
        %915 = vmax.xlane.f32.xlu0 %v914
        %v916 = vpop.xlane.xlu0 %915
        %v917 = vsub.f32 %v909, %v916
        %v918 = vmul.f32 %v917, 1.442695
        %v919 = vpow.pop %v918
        %v920 = vsel %vm544, %v919, 0.0
        %921 = vadd.xlane.f32.xlu0 %v920
        %v922 = vpop.xlane.xlu0 %921
        %v923 = vpack.c.bf16 %v919, %v919
        %924 = vrot.lane.b32.xlu0 %v539, 48
        %v925 = vpop.permute.xlu0 %924
        %v927 = vsel %vm544, %v923, 0
        %v930 = vsel %vm606, %v925, 0
        %932 = vmatprep.subr.bf16.mxu0 0
        %933 = vmatpush1.bf16.msra.mxu0 0
        %934 = vmatprep.subr.bf16.mxu0 0
        %935 = vmatpush1.bf16.msra.mxu0 0
        %936 = vmatprep.subr.bf16.mxu0 0
        %937 = vmatpush1.bf16.msra.mxu0 0
        %938 = vmatprep.subr.bf16.mxu0 0
        %939 = vmatpush1.bf16.msra.mxu0 0
        %940 = vmatprep.subr.bf16.mxu0 0
        %941 = vmatpush1.bf16.msra.mxu0 0
        %942 = vmatprep.subr.bf16.mxu0 0
        %943 = vmatpush1.bf16.msra.mxu0 0
        %944 = vmatprep.subr.bf16.mxu0 0
        %945 = vmatpush1.bf16.msra.mxu0 0
        %946 = vmatprep.subr.bf16.mxu0 0
        %947 = vmatpush1.bf16.msra.mxu0 %v930
        %948 = vmatprep.subr.bf16.mxu0 0
        %949 = vmatpush2.bf16.msra.mxu0 0
        %950 = vmatprep.subr.bf16.mxu0 0
        %951 = vmatpush2.bf16.msra.mxu0 0
        %952 = vmatprep.subr.bf16.mxu0 0
        %953 = vmatpush2.bf16.msra.mxu0 0
        %954 = vmatprep.subr.bf16.mxu0 0
        %955 = vmatpush2.bf16.msra.mxu0 0
        %956 = vmatprep.subr.bf16.mxu0 0
        %957 = vmatpush2.bf16.msra.mxu0 0
        %958 = vmatprep.subr.bf16.mxu0 0
        %959 = vmatpush2.bf16.msra.mxu0 0
        %960 = vmatprep.subr.bf16.mxu0 0
        %961 = vmatpush2.bf16.msra.mxu0 0
        %962 = vmatprep.subr.bf16.mxu0 0
        %963 = vmatpush2.bf16.msra.mxu0 0
        %964 = vmatprep.mubr.bf16.mxu0 0
        %965 = vmatmul.mubr.bf16.gmra.mxu0 %v927
        %v966 = vpop.f32.mrf.mxu0
        %v967 = vadd.f32 0.0, %v966
        %v968 = vpop.f32.mrf.mxu0
        %v969 = vpop.f32.mrf.mxu0
        %v970 = vpop.f32.mrf.mxu0
        %971 = vdwg.mxu0
        %v972 = vrcp.pop %v922
        %v973 = vmul.f32 %v967, %v972
        %v974 = vld [vmem:[#allocation3] sm:$0xff]
        %v975 = vpack.c.bf16 %v973, %v973
        %v976 = vld [vmem:[#allocation10 + $0x8] sm:$0xf]
        %v978 = vsel %vm544, %v975, 0
        %v981 = vsel %vm606, %v976, 0
        %983 = vmatprep.subr.bf16.mxu0 0
        %984 = vmatpush1.bf16.msra.mxu0 0
        %985 = vmatprep.subr.bf16.mxu0 0
        %986 = vmatpush1.bf16.msra.mxu0 0
        %987 = vmatprep.subr.bf16.mxu0 0
        %988 = vmatpush1.bf16.msra.mxu0 0
        %989 = vmatprep.subr.bf16.mxu0 0
        %990 = vmatpush1.bf16.msra.mxu0 0
        %991 = vmatprep.subr.bf16.mxu0 0
        %992 = vmatpush1.bf16.msra.mxu0 0
        %993 = vmatprep.subr.bf16.mxu0 0
        %994 = vmatpush1.bf16.msra.mxu0 0
        %995 = vmatprep.subr.bf16.mxu0 0
        %996 = vmatpush1.bf16.msra.mxu0 0
        %997 = vmatprep.subr.bf16.mxu0 0
        %998 = vmatpush1.bf16.msra.mxu0 %v981
        %999 = vmatprep.subr.bf16.mxu0 0
        %1000 = vmatpush2.bf16.msra.mxu0 0
        %1001 = vmatprep.subr.bf16.mxu0 0
        %1002 = vmatpush2.bf16.msra.mxu0 0
        %1003 = vmatprep.subr.bf16.mxu0 0
        %1004 = vmatpush2.bf16.msra.mxu0 0
        %1005 = vmatprep.subr.bf16.mxu0 0
        %1006 = vmatpush2.bf16.msra.mxu0 0
        %1007 = vmatprep.subr.bf16.mxu0 0
        %1008 = vmatpush2.bf16.msra.mxu0 0
        %1009 = vmatprep.subr.bf16.mxu0 0
        %1010 = vmatpush2.bf16.msra.mxu0 0
        %1011 = vmatprep.subr.bf16.mxu0 0
        %1012 = vmatpush2.bf16.msra.mxu0 0
        %1013 = vmatprep.subr.bf16.mxu0 0
        %1014 = vmatpush2.bf16.msra.mxu0 0
        %1015 = vmatprep.mubr.bf16.mxu0 0
        %1016 = vmatmul.mubr.bf16.gmra.mxu0 %v978
        %v1017 = vpop.f32.mrf.mxu0
        %v1018 = vadd.f32 0.0, %v1017
        %v1019 = vpop.f32.mrf.mxu0
        %v1020 = vpop.f32.mrf.mxu0
        %v1021 = vpop.f32.mrf.mxu0
        %1022 = vdwg.mxu0
        %v1023 = vadd.f32 %v974, %v1018
        %1024 = vst.msk [vmem:[#allocation3] sm:$0xff] %vm495, %v1023
        %1025 = vrot.lane.b32.xlu0 %v539, 104
        %v1026 = vpop.permute.xlu0 %1025
        %1027 = vrot.lane.b32.xlu0 %v539, 72
        %v1028 = vpop.permute.xlu0 %1027
        %v1030 = vsel %vm544, %v1026, 0
        %v1033 = vsel %vm544, %v1028, 0
        %1035 = vmatprep.subr.bf16.mxu0 0
        %1036 = vmatpush1.bf16.xpose.msra.mxu0 0
        %1037 = vmatprep.subr.bf16.mxu0 0
        %1038 = vmatpush1.bf16.xpose.msra.mxu0 0
        %1039 = vmatprep.subr.bf16.mxu0 0
        %1040 = vmatpush1.bf16.xpose.msra.mxu0 0
        %1041 = vmatprep.subr.bf16.mxu0 0
        %1042 = vmatpush1.bf16.xpose.msra.mxu0 0
        %1043 = vmatprep.subr.bf16.mxu0 0
        %1044 = vmatpush1.bf16.xpose.msra.mxu0 0
        %1045 = vmatprep.subr.bf16.mxu0 0
        %1046 = vmatpush1.bf16.xpose.msra.mxu0 0
        %1047 = vmatprep.subr.bf16.mxu0 0
        %1048 = vmatpush1.bf16.xpose.msra.mxu0 0
        %1049 = vmatprep.subr.bf16.mxu0 0
        %1050 = vmatpush1.bf16.xpose.msra.mxu0 %v1033
        %1051 = vmatprep.subr.bf16.mxu0 0
        %1052 = vmatpush2.bf16.xpose.msra.mxu0 0
        %1053 = vmatprep.subr.bf16.mxu0 0
        %1054 = vmatpush2.bf16.xpose.msra.mxu0 0
        %1055 = vmatprep.subr.bf16.mxu0 0
        %1056 = vmatpush2.bf16.xpose.msra.mxu0 0
        %1057 = vmatprep.subr.bf16.mxu0 0
        %1058 = vmatpush2.bf16.xpose.msra.mxu0 0
        %1059 = vmatprep.subr.bf16.mxu0 0
        %1060 = vmatpush2.bf16.xpose.msra.mxu0 0
        %1061 = vmatprep.subr.bf16.mxu0 0
        %1062 = vmatpush2.bf16.xpose.msra.mxu0 0
        %1063 = vmatprep.subr.bf16.mxu0 0
        %1064 = vmatpush2.bf16.xpose.msra.mxu0 0
        %1065 = vmatprep.subr.bf16.mxu0 0
        %1066 = vmatpush2.bf16.xpose.msra.mxu0 0
        %1067 = vmatprep.mubr.bf16.mxu0 0
        %1068 = vmatmul.mubr.bf16.gmra.mxu0 %v1030
        %v1069 = vpop.f32.mrf.mxu0
        %v1070 = vadd.f32 %v540, %v1069
        %v1071 = vpop.f32.mrf.mxu0
        %v1072 = vpop.f32.mrf.mxu0
        %v1073 = vpop.f32.mrf.mxu0
        %1074 = vdwg.mxu0
        %v1075 = vsel %vm544, %v1070, -inf
        %1076 = vmax.xlane.f32.xlu0 %v1075
        %v1077 = vpop.xlane.xlu0 %1076
        %v1078 = vsub.f32 %v1070, %v1077
        %v1079 = vmul.f32 %v1078, 1.442695
        %v1080 = vpow.pop %v1079
        %v1081 = vsel %vm544, %v1080, 0.0
        %1082 = vadd.xlane.f32.xlu0 %v1081
        %v1083 = vpop.xlane.xlu0 %1082
        %v1084 = vpack.c.bf16 %v1080, %v1080
        %1085 = vrot.lane.b32.xlu0 %v539, 40
        %v1086 = vpop.permute.xlu0 %1085
        %v1088 = vsel %vm544, %v1084, 0
        %v1091 = vsel %vm606, %v1086, 0
        %1093 = vmatprep.subr.bf16.mxu0 0
        %1094 = vmatpush1.bf16.msra.mxu0 0
        %1095 = vmatprep.subr.bf16.mxu0 0
        %1096 = vmatpush1.bf16.msra.mxu0 0
        %1097 = vmatprep.subr.bf16.mxu0 0
        %1098 = vmatpush1.bf16.msra.mxu0 0
        %1099 = vmatprep.subr.bf16.mxu0 0
        %1100 = vmatpush1.bf16.msra.mxu0 0
        %1101 = vmatprep.subr.bf16.mxu0 0
        %1102 = vmatpush1.bf16.msra.mxu0 0
        %1103 = vmatprep.subr.bf16.mxu0 0
        %1104 = vmatpush1.bf16.msra.mxu0 0
        %1105 = vmatprep.subr.bf16.mxu0 0
        %1106 = vmatpush1.bf16.msra.mxu0 0
        %1107 = vmatprep.subr.bf16.mxu0 0
        %1108 = vmatpush1.bf16.msra.mxu0 %v1091
        %1109 = vmatprep.subr.bf16.mxu0 0
        %1110 = vmatpush2.bf16.msra.mxu0 0
        %1111 = vmatprep.subr.bf16.mxu0 0
        %1112 = vmatpush2.bf16.msra.mxu0 0
        %1113 = vmatprep.subr.bf16.mxu0 0
        %1114 = vmatpush2.bf16.msra.mxu0 0
        %1115 = vmatprep.subr.bf16.mxu0 0
        %1116 = vmatpush2.bf16.msra.mxu0 0
        %1117 = vmatprep.subr.bf16.mxu0 0
        %1118 = vmatpush2.bf16.msra.mxu0 0
        %1119 = vmatprep.subr.bf16.mxu0 0
        %1120 = vmatpush2.bf16.msra.mxu0 0
        %1121 = vmatprep.subr.bf16.mxu0 0
        %1122 = vmatpush2.bf16.msra.mxu0 0
        %1123 = vmatprep.subr.bf16.mxu0 0
        %1124 = vmatpush2.bf16.msra.mxu0 0
        %1125 = vmatprep.mubr.bf16.mxu0 0
        %1126 = vmatmul.mubr.bf16.gmra.mxu0 %v1088
        %v1127 = vpop.f32.mrf.mxu0
        %v1128 = vadd.f32 0.0, %v1127
        %v1129 = vpop.f32.mrf.mxu0
        %v1130 = vpop.f32.mrf.mxu0
        %v1131 = vpop.f32.mrf.mxu0
        %1132 = vdwg.mxu0
        %v1133 = vrcp.pop %v1083
        %v1134 = vmul.f32 %v1128, %v1133
        %v1135 = vld [vmem:[#allocation3] sm:$0xff]
        %v1136 = vpack.c.bf16 %v1134, %v1134
        %v1137 = vld [vmem:[#allocation10 + $0xc] sm:$0xf]
        %v1139 = vsel %vm544, %v1136, 0
        %v1142 = vsel %vm606, %v1137, 0
        %1144 = vmatprep.subr.bf16.mxu0 0
        %1145 = vmatpush1.bf16.msra.mxu0 0
        %1146 = vmatprep.subr.bf16.mxu0 0
        %1147 = vmatpush1.bf16.msra.mxu0 0
        %1148 = vmatprep.subr.bf16.mxu0 0
        %1149 = vmatpush1.bf16.msra.mxu0 0
        %1150 = vmatprep.subr.bf16.mxu0 0
        %1151 = vmatpush1.bf16.msra.mxu0 0
        %1152 = vmatprep.subr.bf16.mxu0 0
        %1153 = vmatpush1.bf16.msra.mxu0 0
        %1154 = vmatprep.subr.bf16.mxu0 0
        %1155 = vmatpush1.bf16.msra.mxu0 0
        %1156 = vmatprep.subr.bf16.mxu0 0
        %1157 = vmatpush1.bf16.msra.mxu0 0
        %1158 = vmatprep.subr.bf16.mxu0 0
        %1159 = vmatpush1.bf16.msra.mxu0 %v1142
        %1160 = vmatprep.subr.bf16.mxu0 0
        %1161 = vmatpush2.bf16.msra.mxu0 0
        %1162 = vmatprep.subr.bf16.mxu0 0
        %1163 = vmatpush2.bf16.msra.mxu0 0
        %1164 = vmatprep.subr.bf16.mxu0 0
        %1165 = vmatpush2.bf16.msra.mxu0 0
        %1166 = vmatprep.subr.bf16.mxu0 0
        %1167 = vmatpush2.bf16.msra.mxu0 0
        %1168 = vmatprep.subr.bf16.mxu0 0
        %1169 = vmatpush2.bf16.msra.mxu0 0
        %1170 = vmatprep.subr.bf16.mxu0 0
        %1171 = vmatpush2.bf16.msra.mxu0 0
        %1172 = vmatprep.subr.bf16.mxu0 0
        %1173 = vmatpush2.bf16.msra.mxu0 0
        %1174 = vmatprep.subr.bf16.mxu0 0
        %1175 = vmatpush2.bf16.msra.mxu0 0
        %1176 = vmatprep.mubr.bf16.mxu0 0
        %1177 = vmatmul.mubr.bf16.gmra.mxu0 %v1139
        %v1178 = vpop.f32.mrf.mxu0
        %v1179 = vadd.f32 0.0, %v1178
        %v1180 = vpop.f32.mrf.mxu0
        %v1181 = vpop.f32.mrf.mxu0
        %v1182 = vpop.f32.mrf.mxu0
        %1183 = vdwg.mxu0
        %v1184 = vadd.f32 %v1135, %v1179
        %1185 = vst.msk [vmem:[#allocation3] sm:$0xff] %vm495, %v1184
        // Predicated region
        $region73: #{tpu_custom_call.1} parent=51 // pred_check
          %p1186 = pneg %p422
        $region74: #{tpu_custom_call.1} parent=51 // pred_check_branch
          %1188 = sbr.rel (%p1186) target = $region76
        $region75: #{tpu_custom_call.1} parent=51 // pred_region
          %v1189 = vld [vmem:[#allocation3] sm:$0xff]
          %1190 = vst.msk [vmem:[%s416] sm:$0xff] %vm495, %v1189
        $region76: #{tpu_custom_call.1} parent=51 // pred_fallthru
          _
        %s1191 = sand.u32 %s249, 1
        %s1192 = scalar_lea.sflag [#allocation6], %s1191
        %s1193 = sand.u32 %s249, 1
        %s1194 = smul.addr %s1193, 8
        %s1195 = scalar_lea.vmem [#allocation12], %s1194
        // Predicated region
        $region77: #{tpu_custom_call.1} parent=51 // pred_check
          %p1196 = pneg %p259
        $region78: #{tpu_custom_call.1} parent=51 // pred_check_branch
          %1198 = sbr.rel (%p1196) target = $region80
        $region79: #{tpu_custom_call.1} parent=51 // pred_region
          %s1200 = ssub.s32 128, 128
          %1201 = vsyncadd %s1192, %s1200
          %s1202 = sadd.s32 %s33, %s32
          %s1203 = smul.addr %s1202, 128
          %s1204 = scalar_lea.hbm %s8, %s1203
          %s1206 = sshll.u32 %s1195, 4
          %s1207 = int_to_ptr.vmem [resolvable:$true] %s1206
          %1209 = dma.vmem_to_hbm [thread:$0]  %s1207, 128, %s1204, %s1192
        $region80: #{tpu_custom_call.1} parent=51 // pred_fallthru
          _
      $region52: #{tpu_custom_call.1} parent=5 // pred_fallthru
        _
      %p1210 = scmp.le.s32.totalorder 2, %s22
      // Predicated region
      $region81: #{tpu_custom_call.1} parent=5 // pred_check
        %p1211 = pneg %p1210
      $region82: #{tpu_custom_call.1} parent=5 // pred_check_branch
        %1213 = sbr.rel (%p1211) target = $region84
      $region83: #{tpu_custom_call.1} parent=5 // pred_region
        %s1214 = ssub.s32 %s22, 2
        // Predicated region
        $region85: #{tpu_custom_call.1} parent=83 // pred_check
          %p1215 = pneg %p265
        $region86: #{tpu_custom_call.1} parent=83 // pred_check_branch
          %1217 = sbr.rel (%p1215) target = $region88
        $region87: #{tpu_custom_call.1} parent=83 // pred_region
          %s1218 = sand.u32 %s250, 1
          %s1219 = scalar_lea.sflag [#allocation6], %s1218
          %s1220 = sand.u32 %s250, 1
          %s1221 = smul.addr %s1220, 8
          %s1222 = scalar_lea.vmem [#allocation12], %s1221
          %1223 = dma.done %s1219, 128
        $region88: #{tpu_custom_call.1} parent=83 // pred_fallthru
          _
      $region84: #{tpu_custom_call.1} parent=5 // pred_fallthru
        _
    $region6: #{tpu_custom_call.1} parent=1 // loop_footer
      %s26 = sadd.s32 1, %s22
    $region7: #{tpu_custom_call.1} parent=1 // loop_footer_branch
      %21 = sbr.rel target = $region3
    $region8: #{tpu_custom_call.1} parent=1 // loop_exit
      _
    %1224 = vsyncpa [#allocation5], 1
    %s1225 = scalar_lea.sflag [#allocation5], 1
    %1226 = vsyncpa %s1225, 1
    %1227 = vsyncpa [#allocation8], 1
    %1228 = vsyncpa [#allocation11], 1
    %1229 = vsyncpa [#allocation6], 1
    %s1230 = scalar_lea.sflag [#allocation6], 1
    %1231 = vsyncpa %s1230, 1

</llo_original>
